<compile_context>
chip_gen: v7x
topology: tpu7x:2x2x1
jax: 0.10.0
libtpu: 0.0.40
codegen_flags: <defaults>
</compile_context>

<pallas_src>
import jax
import jax.numpy as jnp
from jax.experimental import pallas as pl
from jax.experimental.pallas import tpu as pltpu


def _round_up(x, m):
    return (x + m - 1) // m * m


# -----------------------------------------------------------------------------
# Pallas kernels
# -----------------------------------------------------------------------------
def _mm_bias_relu_kernel(p_ref, w_ref, b_ref, o_ref, acc_ref):
    """acc += p @ w over K tiles; epilogue: relu(acc + b) on the last K tile."""
    k = pl.program_id(1)

    @pl.when(k == 0)
    def _():
        acc_ref[...] = jnp.zeros_like(acc_ref)

    acc_ref[...] += jnp.dot(p_ref[...], w_ref[...],
                            preferred_element_type=jnp.float32)

    @pl.when(k == pl.num_programs(1) - 1)
    def _():
        o_ref[...] = jnp.maximum(acc_ref[...] + b_ref[...], 0.0).astype(o_ref.dtype)


def _mm_bias_relu_1x1_kernel(p_ref, w1_ref, b1_ref, w2_ref, b2_ref, o_ref, acc_ref):
    """Same as above, plus a fused 1x1 ConvBNReLU (second small matmul) in the epilogue."""
    k = pl.program_id(1)

    @pl.when(k == 0)
    def _():
        acc_ref[...] = jnp.zeros_like(acc_ref)

    acc_ref[...] += jnp.dot(p_ref[...], w1_ref[...],
                            preferred_element_type=jnp.float32)

    @pl.when(k == pl.num_programs(1) - 1)
    def _():
        h = jnp.maximum(acc_ref[...] + b1_ref[...], 0.0)          # (tm, C1) f32
        out = jnp.dot(h.astype(w2_ref.dtype), w2_ref[...],
                      preferred_element_type=jnp.float32)
        o_ref[...] = jnp.maximum(out + b2_ref[...], 0.0).astype(o_ref.dtype)


# -----------------------------------------------------------------------------
# Tiled pallas_call wrapper
# -----------------------------------------------------------------------------
def _tile_sizes(M, K):
    # K is padded to a lane-multiple; single K tile when small, else 512-wide.
    K_pad = _round_up(K, 128)
    if K_pad <= 1024:
        tk = K_pad
    else:
        tk = 512
        K_pad = _round_up(K, tk)
    # M tile: whole (8-padded) M when small, else 512 rows.
    tm = _round_up(M, 8) if M <= 512 else 512
    M_pad = _round_up(M, tm)
    return M_pad, tm, K_pad, tk


def _fused_matmul_bias_relu(patches, w_mat, bias, w2_mat=None, bias2=None,
                            out_dtype=jnp.bfloat16):
    """relu(patches @ w_mat + bias), optionally followed by a fused
    relu(. @ w2_mat + bias2) (the 1x1 ConvBNReLU)."""
    M, K = patches.shape
    C1 = w_mat.shape[1]
    M_pad, tm, K_pad, tk = _tile_sizes(M, K)

    # bf16 operands, f32 accumulation.  Zero padding keeps results exact.
    p = jnp.pad(patches.astype(jnp.bfloat16), ((0, M_pad - M), (0, K_pad - K)))
    w1 = jnp.pad(w_mat.astype(jnp.bfloat16), ((0, K_pad - K), (0, 0)))
    b1 = bias.astype(jnp.float32)

    grid = (M_pad // tm, K_pad // tk)
    compiler_params = pltpu.CompilerParams(
        dimension_semantics=("parallel", "arbitrary"),
        # Tiles are capped (tm<=512, tk<=1024, Cout<=128, bf16 operands), so the
        # double-buffered footprint is a few MiB — well inside the scoped-VMEM
        # budget of every generation, including v7x's 64 MiB physical VMEM.
        vmem_limit_bytes=32 * 1024 * 1024,
    )

    if w2_mat is None:
        out = pl.pallas_call(
            _mm_bias_relu_kernel,
            out_shape=jax.ShapeDtypeStruct((M_pad, C1), out_dtype),
            grid=grid,
            in_specs=[
                pl.BlockSpec((tm, tk), lambda m, k: (m, k)),
                pl.BlockSpec((tk, C1), lambda m, k: (k, 0)),
                pl.BlockSpec((1, C1), lambda m, k: (0, 0)),
            ],
            out_specs=pl.BlockSpec((tm, C1), lambda m, k: (m, 0)),
            scratch_shapes=[pltpu.VMEM((tm, C1), jnp.float32)],
            compiler_params=compiler_params,
        )(p, w1, b1)
    else:
        C2 = w2_mat.shape[1]
        w2 = w2_mat.astype(jnp.bfloat16)
        b2 = bias2.astype(jnp.float32)
        out = pl.pallas_call(
            _mm_bias_relu_1x1_kernel,
            out_shape=jax.ShapeDtypeStruct((M_pad, C2), out_dtype),
            grid=grid,
            in_specs=[
                pl.BlockSpec((tm, tk), lambda m, k: (m, k)),
                pl.BlockSpec((tk, C1), lambda m, k: (k, 0)),
                pl.BlockSpec((1, C1), lambda m, k: (0, 0)),
                pl.BlockSpec((C1, C2), lambda m, k: (0, 0)),
                pl.BlockSpec((1, C2), lambda m, k: (0, 0)),
            ],
            out_specs=pl.BlockSpec((tm, C2), lambda m, k: (m, 0)),
            scratch_shapes=[pltpu.VMEM((tm, C1), jnp.float32)],
            compiler_params=compiler_params,
        )(p, w1, b1, w2, b2)
    return out[:M]


# -----------------------------------------------------------------------------
# Layer plumbing (NHWC, BN folded into weights)
# -----------------------------------------------------------------------------
def _im2col_nhwc(x, ks, stride, pad):
    """x: (N, H, W, C) -> patches (N*Ho*Wo, ks*ks*C), tap-major / channel-minor."""
    N, H, W, C = x.shape
    Ho = (H + 2 * pad - ks) // stride + 1
    Wo = (W + 2 * pad - ks) // stride + 1
    xp = jnp.pad(x, ((0, 0), (pad, pad), (pad, pad), (0, 0)))
    taps = []
    for i in range(ks):
        for j in range(ks):
            taps.append(xp[:, i:i + stride * Ho:stride, j:j + stride * Wo:stride, :])
    patches = taps[0] if len(taps) == 1 else jnp.concatenate(taps, axis=-1)
    return patches.reshape(N * Ho * Wo, ks * ks * C), Ho, Wo


def _fold_bn_into_weight(params, eps=1e-5):
    """(Cout,Cin,kh,kw) conv weight + BN stats -> (kh*kw*Cin, Cout) f32 weight
    with the BN scale folded in, plus a (1, Cout) f32 bias."""
    w, gamma, beta, mean, var = params
    cout = w.shape[0]
    inv_std = gamma / jnp.sqrt(var + eps)                      # (Cout,)
    # (kh, kw, Cin, Cout) row order matches the tap-major / channel-minor patches.
    w_mat = jnp.transpose(w, (2, 3, 1, 0)).reshape(-1, cout)
    w_mat = w_mat * inv_std[None, :]                           # fold scale in f32
    bias = (beta - mean * inv_std)[None, :]                    # (1, Cout)
    return w_mat.astype(jnp.float32), bias.astype(jnp.float32)


def conv_bn_relu_nhwc(x, params, ks, stride, pad, eps=1e-5, out_dtype=jnp.bfloat16):
    N = x.shape[0]
    cout = params[0].shape[0]
    patches, Ho, Wo = _im2col_nhwc(x, ks, stride, pad)
    w_mat, bias = _fold_bn_into_weight(params, eps)
    out = _fused_matmul_bias_relu(patches, w_mat, bias, out_dtype=out_dtype)
    return out.reshape(N, Ho, Wo, cout)


def conv_bn_relu_plus_1x1_nhwc(x, params, params_1x1, ks, stride, pad, eps=1e-5):
    N = x.shape[0]
    cout2 = params_1x1[0].shape[0]
    patches, Ho, Wo = _im2col_nhwc(x, ks, stride, pad)
    w1_mat, b1 = _fold_bn_into_weight(params, eps)
    w2_mat, b2 = _fold_bn_into_weight(params_1x1, eps)         # (C1, Cout2)
    out = _fused_matmul_bias_relu(patches, w1_mat, b1, w2_mat=w2_mat, bias2=b2,
                                  out_dtype=jnp.float32)
    return out.reshape(N, Ho, Wo, cout2)


# -----------------------------------------------------------------------------
# Module: params + forward
# -----------------------------------------------------------------------------
def init_conv_bn_params(key, cin, cout, ks):
    kw, kg, kb, km, kv = jax.random.split(key, 5)
    w = 0.1 * jax.random.normal(kw, (cout, cin, ks, ks), jnp.float32)
    gamma = 1.0 + 0.1 * jax.random.normal(kg, (cout,), jnp.float32)
    beta = 0.1 * jax.random.normal(kb, (cout,), jnp.float32)
    mean = 0.1 * jax.random.normal(km, (cout,), jnp.float32)
    var = 1.0 + 0.1 * jax.random.uniform(kv, (cout,), jnp.float32)
    return (w, gamma, beta, mean, var)


def spatial_path_init(key, in_channels, out_channels):
    inner = 64
    k1, k2, k3, k4 = jax.random.split(key, 4)
    return {
        "ds0": init_conv_bn_params(k1, in_channels, inner, 7),
        "ds1": init_conv_bn_params(k2, inner, inner, 3),
        "ds2": init_conv_bn_params(k3, inner, inner, 3),
        "conv1x1": init_conv_bn_params(k4, inner, out_channels, 1),
    }


@jax.jit
def spatial_path_forward(params, x):
    # External contract matches the PyTorch module: NCHW in, NCHW out.
    x = jnp.transpose(x, (0, 2, 3, 1))                 # -> NHWC once at entry
    x = conv_bn_relu_nhwc(x, params["ds0"], ks=7, stride=2, pad=3)
    x = conv_bn_relu_nhwc(x, params["ds1"], ks=3, stride=2, pad=1)
    # Last 3x3 downsample with the 1x1 ConvBNReLU fused into the same kernel.
    out = conv_bn_relu_plus_1x1_nhwc(x, params["ds2"], params["conv1x1"],
                                     ks=3, stride=2, pad=1)
    return jnp.transpose(out, (0, 3, 1, 2))            # -> NCHW once at exit


if __name__ == "__main__":
    key = jax.random.PRNGKey(0)
    kx, kp = jax.random.split(key)
    N, Cin, H, W = 2, 4, 16, 16
    Cout = 32
    x = jax.random.normal(kx, (N, Cin, H, W), jnp.float32)
    params = spatial_path_init(kp, Cin, Cout)
    out = spatial_path_forward(params, x)
    out = jax.block_until_ready(out)
    assert out.shape == (N, Cout, H // 8, W // 8), out.shape
    assert bool(jnp.all(out >= 0.0))  # ReLU sanity check
    print("KERNEL_OK")
</pallas_src>

<mosaic_0001>
module attributes {stable_mosaic.version = 11 : i64} {
  func.func @_mm_bias_relu_kernel(%arg0: i32, %arg1: i32, %arg2: memref<128x256xbf16, #tpu.memory_space<vmem>>, %arg3: memref<256x64xbf16, #tpu.memory_space<vmem>>, %arg4: memref<1x64xf32, #tpu.memory_space<vmem>>, %arg5: memref<128x64xbf16, #tpu.memory_space<vmem>>, %arg6: memref<128x64xf32, #tpu.memory_space<vmem>>) attributes {dimension_semantics = [#tpu.dimension_semantics<parallel>, #tpu.dimension_semantics<arbitrary>], iteration_bounds = array<i64: 1, 1>, scalar_prefetch = 0 : i64, scratch_operands = 1 : i64, tpu.core_type = #tpu.core_type<tc>, window_params = [{transform_indices = @transform_0, window_bounds = array<i64: 128, 256>}, {transform_indices = @transform_1, window_bounds = array<i64: 256, 64>}, {pipeline_mode = #tpu.pipeline_mode<synchronous>, transform_indices = @transform_2, window_bounds = array<i64: 1, 64>}, {transform_indices = @transform_3, window_bounds = array<i64: 128, 64>}]} {
    %c0_i32 = arith.constant 0 : i32
    %0 = arith.cmpi eq, %arg1, %c0_i32 : i32
    %1 = arith.extui %0 : i1 to i32
    %c0_i32_0 = arith.constant 0 : i32
    %2 = arith.cmpi ne, %1, %c0_i32_0 : i32
    scf.if %2 {
      %cst_10 = arith.constant 0.000000e+00 : f32
      %12 = vector.broadcast %cst_10 : f32 to vector<128x64xf32>
      %c0_11 = arith.constant 0 : index
      %c0_12 = arith.constant 0 : index
      %13 = vector.load %arg6[%c0_11, %c0_12] : memref<128x64xf32, #tpu.memory_space<vmem>>, vector<128x64xf32>
      tpu.vector_store %arg6[%c0_11, %c0_12], %12 {strides = array<i32>} : memref<128x64xf32, #tpu.memory_space<vmem>>, vector<128x64xf32>,
    } else {
    }
    %c0 = arith.constant 0 : index
    %c0_1 = arith.constant 0 : index
    %3 = vector.load %arg6[%c0, %c0_1] : memref<128x64xf32, #tpu.memory_space<vmem>>, vector<128x64xf32>
    %c0_2 = arith.constant 0 : index
    %c0_3 = arith.constant 0 : index
    %4 = vector.load %arg2[%c0_2, %c0_3] : memref<128x256xbf16, #tpu.memory_space<vmem>>, vector<128x256xbf16>
    %c0_4 = arith.constant 0 : index
    %c0_5 = arith.constant 0 : index
    %5 = vector.load %arg3[%c0_4, %c0_5] : memref<256x64xbf16, #tpu.memory_space<vmem>>, vector<256x64xbf16>
    %cst = arith.constant dense<0.000000e+00> : vector<128x64xf32>
    %6 = tpu.matmul %4, %5, %cst {dimension_numbers = #tpu.dot_dimension_numbers<[1], [0], [0], [1], [0, 0, 1, 1], [], []>} : vector<128x256xbf16>, vector<256x64xbf16>, vector<128x64xf32> -> vector<128x64xf32>
    %7 = arith.addf %3, %6 : vector<128x64xf32>
    %c0_6 = arith.constant 0 : index
    %c0_7 = arith.constant 0 : index
    %8 = vector.load %arg6[%c0_6, %c0_7] : memref<128x64xf32, #tpu.memory_space<vmem>>, vector<128x64xf32>
    tpu.vector_store %arg6[%c0_6, %c0_7], %7 {strides = array<i32>} : memref<128x64xf32, #tpu.memory_space<vmem>>, vector<128x64xf32>,
    %c0_i32_8 = arith.constant 0 : i32
    %9 = arith.cmpi eq, %arg1, %c0_i32_8 : i32
    %10 = arith.extui %9 : i1 to i32
    %c0_i32_9 = arith.constant 0 : i32
    %11 = arith.cmpi ne, %10, %c0_i32_9 : i32
    scf.if %11 {
      %c0_10 = arith.constant 0 : index
      %c0_11 = arith.constant 0 : index
      %12 = vector.load %arg6[%c0_10, %c0_11] : memref<128x64xf32, #tpu.memory_space<vmem>>, vector<128x64xf32>
      %c0_12 = arith.constant 0 : index
      %c0_13 = arith.constant 0 : index
      %13 = vector.load %arg4[%c0_12, %c0_13] : memref<1x64xf32, #tpu.memory_space<vmem>>, vector<1x64xf32>
      %14 = vector.broadcast %13 : vector<1x64xf32> to vector<128x64xf32>
      %15 = arith.addf %12, %14 : vector<128x64xf32>
      %cst_14 = arith.constant 0.000000e+00 : f32
      %16 = vector.broadcast %cst_14 : f32 to vector<128x64xf32>
      %17 = arith.maximumf %15, %16 : vector<128x64xf32>
      %18 = arith.truncf %17 : vector<128x64xf32> to vector<128x64xbf16>
      %c0_15 = arith.constant 0 : index
      %c0_16 = arith.constant 0 : index
      %19 = vector.load %arg5[%c0_15, %c0_16] : memref<128x64xbf16, #tpu.memory_space<vmem>>, vector<128x64xbf16>
      tpu.vector_store %arg5[%c0_15, %c0_16], %18 {strides = array<i32>} : memref<128x64xbf16, #tpu.memory_space<vmem>>, vector<128x64xbf16>,
    } else {
    }
    return
  }
  func.func @transform_0(%arg0: i32, %arg1: i32) -> (i32, i32) {
    %c0_i32 = arith.constant 0 : i32
    return %arg0, %arg1 : i32, i32
  }
  func.func @transform_1(%arg0: i32, %arg1: i32) -> (i32, i32) {
    %c0_i32 = arith.constant 0 : i32
    %c0_i32_0 = arith.constant 0 : i32
    return %arg1, %c0_i32 : i32, i32
  }
  func.func @transform_2(%arg0: i32, %arg1: i32) -> (i32, i32) {
    %c0_i32 = arith.constant 0 : i32
    %c0_i32_0 = arith.constant 0 : i32
    %c0_i32_1 = arith.constant 0 : i32
    return %c0_i32, %c0_i32_0 : i32, i32
  }
  func.func @transform_3(%arg0: i32, %arg1: i32) -> (i32, i32) {
    %c0_i32 = arith.constant 0 : i32
    %c0_i32_0 = arith.constant 0 : i32
    return %arg0, %c0_i32 : i32, i32
  }
}

module attributes {stable_mosaic.version = 11 : i64} {
  func.func @_mm_bias_relu_kernel(%arg0: i32, %arg1: i32, %arg2: memref<32x640xbf16, #tpu.memory_space<vmem>>, %arg3: memref<640x64xbf16, #tpu.memory_space<vmem>>, %arg4: memref<1x64xf32, #tpu.memory_space<vmem>>, %arg5: memref<32x64xbf16, #tpu.memory_space<vmem>>, %arg6: memref<32x64xf32, #tpu.memory_space<vmem>>) attributes {dimension_semantics = [#tpu.dimension_semantics<parallel>, #tpu.dimension_semantics<arbitrary>], iteration_bounds = array<i64: 1, 1>, scalar_prefetch = 0 : i64, scratch_operands = 1 : i64, tpu.core_type = #tpu.core_type<tc>, window_params = [{transform_indices = @transform_0, window_bounds = array<i64: 32, 640>}, {transform_indices = @transform_1, window_bounds = array<i64: 640, 64>}, {pipeline_mode = #tpu.pipeline_mode<synchronous>, transform_indices = @transform_2, window_bounds = array<i64: 1, 64>}, {transform_indices = @transform_3, window_bounds = array<i64: 32, 64>}]} {
    %c0_i32 = arith.constant 0 : i32
    %0 = arith.cmpi eq, %arg1, %c0_i32 : i32
    %1 = arith.extui %0 : i1 to i32
    %c0_i32_0 = arith.constant 0 : i32
    %2 = arith.cmpi ne, %1, %c0_i32_0 : i32
    scf.if %2 {
      %cst_10 = arith.constant 0.000000e+00 : f32
      %12 = vector.broadcast %cst_10 : f32 to vector<32x64xf32>
      %c0_11 = arith.constant 0 : index
      %c0_12 = arith.constant 0 : index
      %13 = vector.load %arg6[%c0_11, %c0_12] : memref<32x64xf32, #tpu.memory_space<vmem>>, vector<32x64xf32>
      tpu.vector_store %arg6[%c0_11, %c0_12], %12 {strides = array<i32>} : memref<32x64xf32, #tpu.memory_space<vmem>>, vector<32x64xf32>,
    } else {
    }
    %c0 = arith.constant 0 : index
    %c0_1 = arith.constant 0 : index
    %3 = vector.load %arg6[%c0, %c0_1] : memref<32x64xf32, #tpu.memory_space<vmem>>, vector<32x64xf32>
    %c0_2 = arith.constant 0 : index
    %c0_3 = arith.constant 0 : index
    %4 = vector.load %arg2[%c0_2, %c0_3] : memref<32x640xbf16, #tpu.memory_space<vmem>>, vector<32x640xbf16>
    %c0_4 = arith.constant 0 : index
    %c0_5 = arith.constant 0 : index
    %5 = vector.load %arg3[%c0_4, %c0_5] : memref<640x64xbf16, #tpu.memory_space<vmem>>, vector<640x64xbf16>
    %cst = arith.constant dense<0.000000e+00> : vector<32x64xf32>
    %6 = tpu.matmul %4, %5, %cst {dimension_numbers = #tpu.dot_dimension_numbers<[1], [0], [0], [1], [0, 0, 1, 1], [], []>} : vector<32x640xbf16>, vector<640x64xbf16>, vector<32x64xf32> -> vector<32x64xf32>
    %7 = arith.addf %3, %6 : vector<32x64xf32>
    %c0_6 = arith.constant 0 : index
    %c0_7 = arith.constant 0 : index
    %8 = vector.load %arg6[%c0_6, %c0_7] : memref<32x64xf32, #tpu.memory_space<vmem>>, vector<32x64xf32>
    tpu.vector_store %arg6[%c0_6, %c0_7], %7 {strides = array<i32>} : memref<32x64xf32, #tpu.memory_space<vmem>>, vector<32x64xf32>,
    %c0_i32_8 = arith.constant 0 : i32
    %9 = arith.cmpi eq, %arg1, %c0_i32_8 : i32
    %10 = arith.extui %9 : i1 to i32
    %c0_i32_9 = arith.constant 0 : i32
    %11 = arith.cmpi ne, %10, %c0_i32_9 : i32
    scf.if %11 {
      %c0_10 = arith.constant 0 : index
      %c0_11 = arith.constant 0 : index
      %12 = vector.load %arg6[%c0_10, %c0_11] : memref<32x64xf32, #tpu.memory_space<vmem>>, vector<32x64xf32>
      %c0_12 = arith.constant 0 : index
      %c0_13 = arith.constant 0 : index
      %13 = vector.load %arg4[%c0_12, %c0_13] : memref<1x64xf32, #tpu.memory_space<vmem>>, vector<1x64xf32>
      %14 = vector.broadcast %13 : vector<1x64xf32> to vector<32x64xf32>
      %15 = arith.addf %12, %14 : vector<32x64xf32>
      %cst_14 = arith.constant 0.000000e+00 : f32
      %16 = vector.broadcast %cst_14 : f32 to vector<32x64xf32>
      %17 = arith.maximumf %15, %16 : vector<32x64xf32>
      %18 = arith.truncf %17 : vector<32x64xf32> to vector<32x64xbf16>
      %c0_15 = arith.constant 0 : index
      %c0_16 = arith.constant 0 : index
      %19 = vector.load %arg5[%c0_15, %c0_16] : memref<32x64xbf16, #tpu.memory_space<vmem>>, vector<32x64xbf16>
      tpu.vector_store %arg5[%c0_15, %c0_16], %18 {strides = array<i32>} : memref<32x64xbf16, #tpu.memory_space<vmem>>, vector<32x64xbf16>,
    } else {
    }
    return
  }
  func.func @transform_0(%arg0: i32, %arg1: i32) -> (i32, i32) {
    %c0_i32 = arith.constant 0 : i32
    return %arg0, %arg1 : i32, i32
  }
  func.func @transform_1(%arg0: i32, %arg1: i32) -> (i32, i32) {
    %c0_i32 = arith.constant 0 : i32
    %c0_i32_0 = arith.constant 0 : i32
    return %arg1, %c0_i32 : i32, i32
  }
  func.func @transform_2(%arg0: i32, %arg1: i32) -> (i32, i32) {
    %c0_i32 = arith.constant 0 : i32
    %c0_i32_0 = arith.constant 0 : i32
    %c0_i32_1 = arith.constant 0 : i32
    return %c0_i32, %c0_i32_0 : i32, i32
  }
  func.func @transform_3(%arg0: i32, %arg1: i32) -> (i32, i32) {
    %c0_i32 = arith.constant 0 : i32
    %c0_i32_0 = arith.constant 0 : i32
    return %arg0, %c0_i32 : i32, i32
  }
}

module attributes {stable_mosaic.version = 11 : i64} {
  func.func @_mm_bias_relu_1x1_kernel(%arg0: i32, %arg1: i32, %arg2: memref<8x640xbf16, #tpu.memory_space<vmem>>, %arg3: memref<640x64xbf16, #tpu.memory_space<vmem>>, %arg4: memref<1x64xf32, #tpu.memory_space<vmem>>, %arg5: memref<64x32xbf16, #tpu.memory_space<vmem>>, %arg6: memref<1x32xf32, #tpu.memory_space<vmem>>, %arg7: memref<8x32xf32, #tpu.memory_space<vmem>>, %arg8: memref<8x64xf32, #tpu.memory_space<vmem>>) attributes {dimension_semantics = [#tpu.dimension_semantics<parallel>, #tpu.dimension_semantics<arbitrary>], iteration_bounds = array<i64: 1, 1>, scalar_prefetch = 0 : i64, scratch_operands = 1 : i64, tpu.core_type = #tpu.core_type<tc>, window_params = [{transform_indices = @transform_0, window_bounds = array<i64: 8, 640>}, {transform_indices = @transform_1, window_bounds = array<i64: 640, 64>}, {pipeline_mode = #tpu.pipeline_mode<synchronous>, transform_indices = @transform_2, window_bounds = array<i64: 1, 64>}, {pipeline_mode = #tpu.pipeline_mode<synchronous>, transform_indices = @transform_3, window_bounds = array<i64: 64, 32>}, {pipeline_mode = #tpu.pipeline_mode<synchronous>, transform_indices = @transform_4, window_bounds = array<i64: 1, 32>}, {transform_indices = @transform_5, window_bounds = array<i64: 8, 32>}]} {
    %c0_i32 = arith.constant 0 : i32
    %0 = arith.cmpi eq, %arg1, %c0_i32 : i32
    %1 = arith.extui %0 : i1 to i32
    %c0_i32_0 = arith.constant 0 : i32
    %2 = arith.cmpi ne, %1, %c0_i32_0 : i32
    scf.if %2 {
      %cst_10 = arith.constant 0.000000e+00 : f32
      %12 = vector.broadcast %cst_10 : f32 to vector<8x64xf32>
      %c0_11 = arith.constant 0 : index
      %c0_12 = arith.constant 0 : index
      %13 = vector.load %arg8[%c0_11, %c0_12] : memref<8x64xf32, #tpu.memory_space<vmem>>, vector<8x64xf32>
      tpu.vector_store %arg8[%c0_11, %c0_12], %12 {strides = array<i32>} : memref<8x64xf32, #tpu.memory_space<vmem>>, vector<8x64xf32>,
    } else {
    }
    %c0 = arith.constant 0 : index
    %c0_1 = arith.constant 0 : index
    %3 = vector.load %arg8[%c0, %c0_1] : memref<8x64xf32, #tpu.memory_space<vmem>>, vector<8x64xf32>
    %c0_2 = arith.constant 0 : index
    %c0_3 = arith.constant 0 : index
    %4 = vector.load %arg2[%c0_2, %c0_3] : memref<8x640xbf16, #tpu.memory_space<vmem>>, vector<8x640xbf16>
    %c0_4 = arith.constant 0 : index
    %c0_5 = arith.constant 0 : index
    %5 = vector.load %arg3[%c0_4, %c0_5] : memref<640x64xbf16, #tpu.memory_space<vmem>>, vector<640x64xbf16>
    %cst = arith.constant dense<0.000000e+00> : vector<8x64xf32>
    %6 = tpu.matmul %4, %5, %cst {dimension_numbers = #tpu.dot_dimension_numbers<[1], [0], [0], [1], [0, 0, 1, 1], [], []>} : vector<8x640xbf16>, vector<640x64xbf16>, vector<8x64xf32> -> vector<8x64xf32>
    %7 = arith.addf %3, %6 : vector<8x64xf32>
    %c0_6 = arith.constant 0 : index
    %c0_7 = arith.constant 0 : index
    %8 = vector.load %arg8[%c0_6, %c0_7] : memref<8x64xf32, #tpu.memory_space<vmem>>, vector<8x64xf32>
    tpu.vector_store %arg8[%c0_6, %c0_7], %7 {strides = array<i32>} : memref<8x64xf32, #tpu.memory_space<vmem>>, vector<8x64xf32>,
    %c0_i32_8 = arith.constant 0 : i32
    %9 = arith.cmpi eq, %arg1, %c0_i32_8 : i32
    %10 = arith.extui %9 : i1 to i32
    %c0_i32_9 = arith.constant 0 : i32
    %11 = arith.cmpi ne, %10, %c0_i32_9 : i32
    scf.if %11 {
      %c0_10 = arith.constant 0 : index
      %c0_11 = arith.constant 0 : index
      %12 = vector.load %arg8[%c0_10, %c0_11] : memref<8x64xf32, #tpu.memory_space<vmem>>, vector<8x64xf32>
      %c0_12 = arith.constant 0 : index
      %c0_13 = arith.constant 0 : index
      %13 = vector.load %arg4[%c0_12, %c0_13] : memref<1x64xf32, #tpu.memory_space<vmem>>, vector<1x64xf32>
      %14 = vector.broadcast %13 : vector<1x64xf32> to vector<8x64xf32>
      %15 = arith.addf %12, %14 : vector<8x64xf32>
      %cst_14 = arith.constant 0.000000e+00 : f32
      %16 = vector.broadcast %cst_14 : f32 to vector<8x64xf32>
      %17 = arith.maximumf %15, %16 : vector<8x64xf32>
      %18 = arith.truncf %17 : vector<8x64xf32> to vector<8x64xbf16>
      %c0_15 = arith.constant 0 : index
      %c0_16 = arith.constant 0 : index
      %19 = vector.load %arg5[%c0_15, %c0_16] : memref<64x32xbf16, #tpu.memory_space<vmem>>, vector<64x32xbf16>
      %cst_17 = arith.constant dense<0.000000e+00> : vector<8x32xf32>
      %20 = tpu.matmul %18, %19, %cst_17 {dimension_numbers = #tpu.dot_dimension_numbers<[1], [0], [0], [1], [0, 0, 1, 1], [], []>} : vector<8x64xbf16>, vector<64x32xbf16>, vector<8x32xf32> -> vector<8x32xf32>
      %c0_18 = arith.constant 0 : index
      %c0_19 = arith.constant 0 : index
      %21 = vector.load %arg6[%c0_18, %c0_19] : memref<1x32xf32, #tpu.memory_space<vmem>>, vector<1x32xf32>
      %22 = vector.broadcast %21 : vector<1x32xf32> to vector<8x32xf32>
      %23 = arith.addf %20, %22 : vector<8x32xf32>
      %cst_20 = arith.constant 0.000000e+00 : f32
      %24 = vector.broadcast %cst_20 : f32 to vector<8x32xf32>
      %25 = arith.maximumf %23, %24 : vector<8x32xf32>
      %c0_21 = arith.constant 0 : index
      %c0_22 = arith.constant 0 : index
      %26 = vector.load %arg7[%c0_21, %c0_22] : memref<8x32xf32, #tpu.memory_space<vmem>>, vector<8x32xf32>
      tpu.vector_store %arg7[%c0_21, %c0_22], %25 {strides = array<i32>} : memref<8x32xf32, #tpu.memory_space<vmem>>, vector<8x32xf32>,
    } else {
    }
    return
  }
  func.func @transform_0(%arg0: i32, %arg1: i32) -> (i32, i32) {
    %c0_i32 = arith.constant 0 : i32
    return %arg0, %arg1 : i32, i32
  }
  func.func @transform_1(%arg0: i32, %arg1: i32) -> (i32, i32) {
    %c0_i32 = arith.constant 0 : i32
    %c0_i32_0 = arith.constant 0 : i32
    return %arg1, %c0_i32 : i32, i32
  }
  func.func @transform_2(%arg0: i32, %arg1: i32) -> (i32, i32) {
    %c0_i32 = arith.constant 0 : i32
    %c0_i32_0 = arith.constant 0 : i32
    %c0_i32_1 = arith.constant 0 : i32
    return %c0_i32, %c0_i32_0 : i32, i32
  }
  func.func @transform_3(%arg0: i32, %arg1: i32) -> (i32, i32) {
    %c0_i32 = arith.constant 0 : i32
    %c0_i32_0 = arith.constant 0 : i32
    %c0_i32_1 = arith.constant 0 : i32
    return %c0_i32, %c0_i32_0 : i32, i32
  }
  func.func @transform_4(%arg0: i32, %arg1: i32) -> (i32, i32) {
    %c0_i32 = arith.constant 0 : i32
    %c0_i32_0 = arith.constant 0 : i32
    %c0_i32_1 = arith.constant 0 : i32
    return %c0_i32, %c0_i32_0 : i32, i32
  }
  func.func @transform_5(%arg0: i32, %arg1: i32) -> (i32, i32) {
    %c0_i32 = arith.constant 0 : i32
    %c0_i32_0 = arith.constant 0 : i32
    return %arg0, %c0_i32 : i32, i32
  }
}

</mosaic_0001>

<llo_original>
// kernel: spatial_path_forward.3
$region0: #{spatial_path_forward.3}
  #allocation0 [shape = 'u32[]', space=smem, size = 0x4, offset = 0x4, fixed_abs, tag = 'smem constant byte address 0x4 - core index']
  #allocation1 [shape = 'u32[144,128]{1,0:T(1,128)}', space=vmem, size = 0x12000, scoped, tag = 'internal scratch']
  #allocation2 [shape = 'f32[128,64]{1,0:T(8,128)}', space=vmem, size = 0x10000, scoped, tag = 'scratch operand']
  %s0 = inlined_call_operand.vmem [shape: bf16[128,256], index: 0, kind: input, shape index: {}]
  %s1 = inlined_call_operand.vmem [shape: bf16[256,64], index: 1, kind: input, shape index: {}]
  %s2 = inlined_call_operand.vmem [shape: f32[1,64], index: 2, kind: input, shape index: {}]
  %s3 = inlined_call_operand.vmem [shape: bf16[128,64], index: 3, kind: output, shape index: {}]
  %s4 = sld [smem:[#allocation0]]
  $region30: #{spatial_path_forward.3} parent=0
    _
  %s6 = ssub.s32 1, %s4
  %s7 = scalar_select 0, %s6, %s4
  // Predicated region
  $region2: #{spatial_path_forward.3} parent=0 // pred_check
    _
  $region3: #{spatial_path_forward.3} parent=0 // pred_check_branch
    %9 = sbr.rel (0) target = $region5
  $region4: #{spatial_path_forward.3} parent=0 // pred_region
    _
  $region5: #{spatial_path_forward.3} parent=0 // pred_fallthru
    _
  // Predicated region
  $region6: #{spatial_path_forward.3} parent=0 // pred_check
    _
  $region7: #{spatial_path_forward.3} parent=0 // pred_check_branch
    %11 = sbr.rel (0) target = $region9
  $region8: #{spatial_path_forward.3} parent=0 // pred_region
    _
  $region9: #{spatial_path_forward.3} parent=0 // pred_fallthru
    _
  // Predicated region
  $region10: #{spatial_path_forward.3} parent=0 // pred_check
    _
  $region11: #{spatial_path_forward.3} parent=0 // pred_check_branch
    %13 = sbr.rel (0) target = $region13
  $region12: #{spatial_path_forward.3} parent=0 // pred_region
    _
  $region13: #{spatial_path_forward.3} parent=0 // pred_fallthru
    _
  %p15 = scmp.eq.s32.totalorder 0, 0
  // Predicated region
  $region14: #{spatial_path_forward.3} parent=0 // pred_check
    %p16 = pneg %p15
  $region15: #{spatial_path_forward.3} parent=0 // pred_check_branch
    %18 = sbr.rel (%p16) target = $region17
  $region16: #{spatial_path_forward.3} parent=0 // pred_region
    %vm19 = vcmask 523264
    %20 = vst.msk [vmem:[#allocation2] sm:$0xff] %vm19, 0.0
    %21 = vst.msk [vmem:[#allocation2 + $0x8] sm:$0xff] %vm19, 0.0
    %22 = vst.msk [vmem:[#allocation2 + $0x10] sm:$0xff] %vm19, 0.0
    %23 = vst.msk [vmem:[#allocation2 + $0x18] sm:$0xff] %vm19, 0.0
    %24 = vst.msk [vmem:[#allocation2 + $0x20] sm:$0xff] %vm19, 0.0
    %25 = vst.msk [vmem:[#allocation2 + $0x28] sm:$0xff] %vm19, 0.0
    %26 = vst.msk [vmem:[#allocation2 + $0x30] sm:$0xff] %vm19, 0.0
    %27 = vst.msk [vmem:[#allocation2 + $0x38] sm:$0xff] %vm19, 0.0
    %28 = vst.msk [vmem:[#allocation2 + $0x40] sm:$0xff] %vm19, 0.0
    %29 = vst.msk [vmem:[#allocation2 + $0x48] sm:$0xff] %vm19, 0.0
    %30 = vst.msk [vmem:[#allocation2 + $0x50] sm:$0xff] %vm19, 0.0
    %31 = vst.msk [vmem:[#allocation2 + $0x58] sm:$0xff] %vm19, 0.0
    %32 = vst.msk [vmem:[#allocation2 + $0x60] sm:$0xff] %vm19, 0.0
    %33 = vst.msk [vmem:[#allocation2 + $0x68] sm:$0xff] %vm19, 0.0
    %34 = vst.msk [vmem:[#allocation2 + $0x70] sm:$0xff] %vm19, 0.0
    %35 = vst.msk [vmem:[#allocation2 + $0x78] sm:$0xff] %vm19, 0.0
  $region17: #{spatial_path_forward.3} parent=0 // pred_fallthru
    _
  %v36 = vld [vmem:[#allocation2] sm:$0xff]
  %v37 = vld [vmem:[#allocation2 + $0x8] sm:$0xff]
  %v38 = vld [vmem:[#allocation2 + $0x10] sm:$0xff]
  %v39 = vld [vmem:[#allocation2 + $0x18] sm:$0xff]
  %v40 = vld [vmem:[#allocation2 + $0x20] sm:$0xff]
  %v41 = vld [vmem:[#allocation2 + $0x28] sm:$0xff]
  %v42 = vld [vmem:[#allocation2 + $0x30] sm:$0xff]
  %v43 = vld [vmem:[#allocation2 + $0x38] sm:$0xff]
  %v44 = vld [vmem:[#allocation2 + $0x40] sm:$0xff]
  %v45 = vld [vmem:[#allocation2 + $0x48] sm:$0xff]
  %v46 = vld [vmem:[#allocation2 + $0x50] sm:$0xff]
  %v47 = vld [vmem:[#allocation2 + $0x58] sm:$0xff]
  %v48 = vld [vmem:[#allocation2 + $0x60] sm:$0xff]
  %v49 = vld [vmem:[#allocation2 + $0x68] sm:$0xff]
  %v50 = vld [vmem:[#allocation2 + $0x70] sm:$0xff]
  %v51 = vld [vmem:[#allocation2 + $0x78] sm:$0xff]
  %v52 = vld [vmem:[%s0] sm:$0xff]
  %v53 = vld [vmem:[%s0 + $0x8] sm:$0xff]
  %v54 = vld [vmem:[%s0 + $0x10] sm:$0xff]
  %v55 = vld [vmem:[%s0 + $0x18] sm:$0xff]
  %v56 = vld [vmem:[%s0 + $0x20] sm:$0xff]
  %v57 = vld [vmem:[%s0 + $0x28] sm:$0xff]
  %v58 = vld [vmem:[%s0 + $0x30] sm:$0xff]
  %v59 = vld [vmem:[%s0 + $0x38] sm:$0xff]
  %v60 = vld [vmem:[%s0 + $0x40] sm:$0xff]
  %v61 = vld [vmem:[%s0 + $0x48] sm:$0xff]
  %v62 = vld [vmem:[%s0 + $0x50] sm:$0xff]
  %v63 = vld [vmem:[%s0 + $0x58] sm:$0xff]
  %v64 = vld [vmem:[%s0 + $0x60] sm:$0xff]
  %v65 = vld [vmem:[%s0 + $0x68] sm:$0xff]
  %v66 = vld [vmem:[%s0 + $0x70] sm:$0xff]
  %v67 = vld [vmem:[%s0 + $0x78] sm:$0xff]
  %v68 = vld [vmem:[%s1] sm:$0xf]
  %v69 = vld [vmem:[%s1 + $0x4] sm:$0xf]
  %v70 = vld [vmem:[%s1 + $0x8] sm:$0xf]
  %v71 = vld [vmem:[%s1 + $0xc] sm:$0xf]
  %v72 = vld [vmem:[%s1 + $0x10] sm:$0xf]
  %v73 = vld [vmem:[%s1 + $0x14] sm:$0xf]
  %v74 = vld [vmem:[%s1 + $0x18] sm:$0xf]
  %v75 = vld [vmem:[%s1 + $0x1c] sm:$0xf]
  %v76 = vld [vmem:[%s1 + $0x20] sm:$0xf]
  %v77 = vld [vmem:[%s1 + $0x24] sm:$0xf]
  %v78 = vld [vmem:[%s1 + $0x28] sm:$0xf]
  %v79 = vld [vmem:[%s1 + $0x2c] sm:$0xf]
  %v80 = vld [vmem:[%s1 + $0x30] sm:$0xf]
  %v81 = vld [vmem:[%s1 + $0x34] sm:$0xf]
  %v82 = vld [vmem:[%s1 + $0x38] sm:$0xf]
  %v83 = vld [vmem:[%s1 + $0x3c] sm:$0xf]
  %v84 = vld [vmem:[%s1 + $0x40] sm:$0xf]
  %v85 = vld [vmem:[%s1 + $0x44] sm:$0xf]
  %v86 = vld [vmem:[%s1 + $0x48] sm:$0xf]
  %v87 = vld [vmem:[%s1 + $0x4c] sm:$0xf]
  %v88 = vld [vmem:[%s1 + $0x50] sm:$0xf]
  %v89 = vld [vmem:[%s1 + $0x54] sm:$0xf]
  %v90 = vld [vmem:[%s1 + $0x58] sm:$0xf]
  %v91 = vld [vmem:[%s1 + $0x5c] sm:$0xf]
  %v92 = vld [vmem:[%s1 + $0x60] sm:$0xf]
  %v93 = vld [vmem:[%s1 + $0x64] sm:$0xf]
  %v94 = vld [vmem:[%s1 + $0x68] sm:$0xf]
  %v95 = vld [vmem:[%s1 + $0x6c] sm:$0xf]
  %v96 = vld [vmem:[%s1 + $0x70] sm:$0xf]
  %v97 = vld [vmem:[%s1 + $0x74] sm:$0xf]
  %v98 = vld [vmem:[%s1 + $0x78] sm:$0xf]
  %v99 = vld [vmem:[%s1 + $0x7c] sm:$0xf]
  %v116 = vunpack.c.l.b16 %v52
  %v117 = vunpack.c.h.b16 %v52
  %v118 = vunpack.c.l.b16 %v53
  %v119 = vunpack.c.h.b16 %v53
  %v120 = vunpack.c.l.b16 %v54
  %v121 = vunpack.c.h.b16 %v54
  %v122 = vunpack.c.l.b16 %v55
  %v123 = vunpack.c.h.b16 %v55
  %v124 = vunpack.c.l.b16 %v56
  %v125 = vunpack.c.h.b16 %v56
  %v126 = vunpack.c.l.b16 %v57
  %v127 = vunpack.c.h.b16 %v57
  %v128 = vunpack.c.l.b16 %v58
  %v129 = vunpack.c.h.b16 %v58
  %v130 = vunpack.c.l.b16 %v59
  %v131 = vunpack.c.h.b16 %v59
  %v132 = vunpack.c.l.b16 %v60
  %v133 = vunpack.c.h.b16 %v60
  %v134 = vunpack.c.l.b16 %v61
  %v135 = vunpack.c.h.b16 %v61
  %v136 = vunpack.c.l.b16 %v62
  %v137 = vunpack.c.h.b16 %v62
  %v138 = vunpack.c.l.b16 %v63
  %v139 = vunpack.c.h.b16 %v63
  %v140 = vunpack.c.l.b16 %v64
  %v141 = vunpack.c.h.b16 %v64
  %v142 = vunpack.c.l.b16 %v65
  %v143 = vunpack.c.h.b16 %v65
  %v144 = vunpack.c.l.b16 %v66
  %v145 = vunpack.c.h.b16 %v66
  %v146 = vunpack.c.l.b16 %v67
  %v147 = vunpack.c.h.b16 %v67
  %v148 = vpack.c.b16 %v118, %v116
  %v149 = vpack.c.b16 %v119, %v117
  %v150 = vpack.c.b16 %v122, %v120
  %v151 = vpack.c.b16 %v123, %v121
  %v152 = vpack.c.b16 %v126, %v124
  %v153 = vpack.c.b16 %v127, %v125
  %v154 = vpack.c.b16 %v130, %v128
  %v155 = vpack.c.b16 %v131, %v129
  %v156 = vpack.c.b16 %v134, %v132
  %v157 = vpack.c.b16 %v135, %v133
  %v158 = vpack.c.b16 %v138, %v136
  %v159 = vpack.c.b16 %v139, %v137
  %v160 = vpack.c.b16 %v142, %v140
  %v161 = vpack.c.b16 %v143, %v141
  %v162 = vpack.c.b16 %v146, %v144
  %v163 = vpack.c.b16 %v147, %v145
  %v212 = vunpack.c.l.b16 %v68
  %v213 = vunpack.c.l.b16 %v69
  %v214 = vunpack.c.l.b16 %v70
  %v215 = vunpack.c.l.b16 %v71
  %v216 = vunpack.c.l.b16 %v72
  %v217 = vunpack.c.l.b16 %v73
  %v218 = vunpack.c.l.b16 %v74
  %v219 = vunpack.c.l.b16 %v75
  %v220 = vunpack.c.l.b16 %v76
  %v221 = vunpack.c.l.b16 %v77
  %v222 = vunpack.c.l.b16 %v78
  %v223 = vunpack.c.l.b16 %v79
  %v224 = vunpack.c.l.b16 %v80
  %v225 = vunpack.c.l.b16 %v81
  %v226 = vunpack.c.l.b16 %v82
  %v227 = vunpack.c.l.b16 %v83
  %v228 = vunpack.c.l.b16 %v84
  %v229 = vunpack.c.l.b16 %v85
  %v230 = vunpack.c.l.b16 %v86
  %v231 = vunpack.c.l.b16 %v87
  %v232 = vunpack.c.l.b16 %v88
  %v233 = vunpack.c.l.b16 %v89
  %v234 = vunpack.c.l.b16 %v90
  %v235 = vunpack.c.l.b16 %v91
  %v236 = vunpack.c.l.b16 %v92
  %v237 = vunpack.c.l.b16 %v93
  %v238 = vunpack.c.l.b16 %v94
  %v239 = vunpack.c.l.b16 %v95
  %v240 = vunpack.c.l.b16 %v96
  %v241 = vunpack.c.l.b16 %v97
  %v242 = vunpack.c.l.b16 %v98
  %v243 = vunpack.c.l.b16 %v99
  %v244 = vpack.c.b16 %v213, %v212
  %v245 = vpack.c.b16 %v215, %v214
  %v246 = vpack.c.b16 %v217, %v216
  %v247 = vpack.c.b16 %v219, %v218
  %v248 = vpack.c.b16 %v221, %v220
  %v249 = vpack.c.b16 %v223, %v222
  %v250 = vpack.c.b16 %v225, %v224
  %v251 = vpack.c.b16 %v227, %v226
  %v252 = vpack.c.b16 %v229, %v228
  %v253 = vpack.c.b16 %v231, %v230
  %v254 = vpack.c.b16 %v233, %v232
  %v255 = vpack.c.b16 %v235, %v234
  %v256 = vpack.c.b16 %v237, %v236
  %v257 = vpack.c.b16 %v239, %v238
  %v258 = vpack.c.b16 %v241, %v240
  %v259 = vpack.c.b16 %v243, %v242
  %276 = vmatprep.subr.bf16.mxu0 0
  %277 = vmatpush1.bf16.msra.mxu0 %v244
  %278 = vmatprep.subr.bf16.mxu0 0
  %279 = vmatpush1.bf16.msra.mxu0 %v245
  %280 = vmatprep.subr.bf16.mxu0 0
  %281 = vmatpush1.bf16.msra.mxu0 %v246
  %282 = vmatprep.subr.bf16.mxu0 0
  %283 = vmatpush1.bf16.msra.mxu0 %v247
  %284 = vmatprep.subr.bf16.mxu0 0
  %285 = vmatpush1.bf16.msra.mxu0 %v248
  %286 = vmatprep.subr.bf16.mxu0 0
  %287 = vmatpush1.bf16.msra.mxu0 %v249
  %288 = vmatprep.subr.bf16.mxu0 0
  %289 = vmatpush1.bf16.msra.mxu0 %v250
  %290 = vmatprep.subr.bf16.mxu0 0
  %291 = vmatpush1.bf16.msra.mxu0 %v251
  %292 = vmatprep.subr.bf16.mxu0 0
  %293 = vmatpush1.bf16.msra.mxu0 %v252
  %294 = vmatprep.subr.bf16.mxu0 0
  %295 = vmatpush1.bf16.msra.mxu0 %v253
  %296 = vmatprep.subr.bf16.mxu0 0
  %297 = vmatpush1.bf16.msra.mxu0 %v254
  %298 = vmatprep.subr.bf16.mxu0 0
  %299 = vmatpush1.bf16.msra.mxu0 %v255
  %300 = vmatprep.subr.bf16.mxu0 0
  %301 = vmatpush1.bf16.msra.mxu0 %v256
  %302 = vmatprep.subr.bf16.mxu0 0
  %303 = vmatpush1.bf16.msra.mxu0 %v257
  %304 = vmatprep.subr.bf16.mxu0 0
  %305 = vmatpush1.bf16.msra.mxu0 %v258
  %306 = vmatprep.subr.bf16.mxu0 0
  %307 = vmatpush1.bf16.msra.mxu0 %v259
  %308 = vmatprep.mubr.bf16.mxu0 %v149
  %309 = vmatmul.mubr.bf16.gmra.mrb[0].mxu0 %v148
  %v310 = vpop.f32.mrb[0].mxu0
  %v311 = vadd.f32 0.0, %v310
  %v312 = vpop.f32.mrb[0].mxu0
  %v313 = vpop.f32.mrb[0].mxu0
  %v314 = vadd.f32 0.0, %v313
  %v315 = vpop.f32.mrb[0].mxu0
  %316 = vmatprep.mubr.bf16.mxu0 %v151
  %317 = vmatmul.mubr.bf16.gmra.mrb[0].mxu0 %v150
  %v318 = vpop.f32.mrb[0].mxu0
  %v319 = vadd.f32 0.0, %v318
  %v320 = vpop.f32.mrb[0].mxu0
  %v321 = vpop.f32.mrb[0].mxu0
  %v322 = vadd.f32 0.0, %v321
  %v323 = vpop.f32.mrb[0].mxu0
  %324 = vmatprep.mubr.bf16.mxu0 %v153
  %325 = vmatmul.mubr.bf16.gmra.mrb[0].mxu0 %v152
  %v326 = vpop.f32.mrb[0].mxu0
  %v327 = vadd.f32 0.0, %v326
  %v328 = vpop.f32.mrb[0].mxu0
  %v329 = vpop.f32.mrb[0].mxu0
  %v330 = vadd.f32 0.0, %v329
  %v331 = vpop.f32.mrb[0].mxu0
  %332 = vmatprep.mubr.bf16.mxu0 %v155
  %333 = vmatmul.mubr.bf16.gmra.mrb[0].mxu0 %v154
  %v334 = vpop.f32.mrb[0].mxu0
  %v335 = vadd.f32 0.0, %v334
  %v336 = vpop.f32.mrb[0].mxu0
  %v337 = vpop.f32.mrb[0].mxu0
  %v338 = vadd.f32 0.0, %v337
  %v339 = vpop.f32.mrb[0].mxu0
  %340 = vmatprep.mubr.bf16.mxu0 %v157
  %341 = vmatmul.mubr.bf16.gmra.mrb[0].mxu0 %v156
  %v342 = vpop.f32.mrb[0].mxu0
  %v343 = vadd.f32 0.0, %v342
  %v344 = vpop.f32.mrb[0].mxu0
  %v345 = vpop.f32.mrb[0].mxu0
  %v346 = vadd.f32 0.0, %v345
  %v347 = vpop.f32.mrb[0].mxu0
  %348 = vmatprep.mubr.bf16.mxu0 %v159
  %349 = vmatmul.mubr.bf16.gmra.mrb[0].mxu0 %v158
  %v350 = vpop.f32.mrb[0].mxu0
  %v351 = vadd.f32 0.0, %v350
  %v352 = vpop.f32.mrb[0].mxu0
  %v353 = vpop.f32.mrb[0].mxu0
  %v354 = vadd.f32 0.0, %v353
  %v355 = vpop.f32.mrb[0].mxu0
  %356 = vmatprep.mubr.bf16.mxu0 %v161
  %357 = vmatmul.mubr.bf16.gmra.mrb[0].mxu0 %v160
  %v358 = vpop.f32.mrb[0].mxu0
  %v359 = vadd.f32 0.0, %v358
  %v360 = vpop.f32.mrb[0].mxu0
  %v361 = vpop.f32.mrb[0].mxu0
  %v362 = vadd.f32 0.0, %v361
  %v363 = vpop.f32.mrb[0].mxu0
  %364 = vmatprep.mubr.bf16.mxu0 %v163
  %365 = vmatmul.mubr.bf16.gmra.mrb[0].mxu0 %v162
  %v366 = vpop.f32.mrb[0].mxu0
  %v367 = vadd.f32 0.0, %v366
  %v368 = vpop.f32.mrb[0].mxu0
  %v369 = vpop.f32.mrb[0].mxu0
  %v370 = vadd.f32 0.0, %v369
  %v371 = vpop.f32.mrb[0].mxu0
  %372 = vdwg.mxu0
  %v373 = vadd.f32 %v36, %v311
  %v374 = vadd.f32 %v37, %v314
  %v375 = vadd.f32 %v38, %v319
  %v376 = vadd.f32 %v39, %v322
  %v377 = vadd.f32 %v40, %v327
  %v378 = vadd.f32 %v41, %v330
  %v379 = vadd.f32 %v42, %v335
  %v380 = vadd.f32 %v43, %v338
  %v381 = vadd.f32 %v44, %v343
  %v382 = vadd.f32 %v45, %v346
  %v383 = vadd.f32 %v46, %v351
  %v384 = vadd.f32 %v47, %v354
  %v385 = vadd.f32 %v48, %v359
  %v386 = vadd.f32 %v49, %v362
  %v387 = vadd.f32 %v50, %v367
  %v388 = vadd.f32 %v51, %v370
  %vm389 = vcmask 523264
  %390 = vst.msk [vmem:[#allocation2] sm:$0xff] %vm389, %v373
  %391 = vst.msk [vmem:[#allocation2 + $0x8] sm:$0xff] %vm389, %v374
  %392 = vst.msk [vmem:[#allocation2 + $0x10] sm:$0xff] %vm389, %v375
  %393 = vst.msk [vmem:[#allocation2 + $0x18] sm:$0xff] %vm389, %v376
  %394 = vst.msk [vmem:[#allocation2 + $0x20] sm:$0xff] %vm389, %v377
  %395 = vst.msk [vmem:[#allocation2 + $0x28] sm:$0xff] %vm389, %v378
  %396 = vst.msk [vmem:[#allocation2 + $0x30] sm:$0xff] %vm389, %v379
  %397 = vst.msk [vmem:[#allocation2 + $0x38] sm:$0xff] %vm389, %v380
  %398 = vst.msk [vmem:[#allocation2 + $0x40] sm:$0xff] %vm389, %v381
  %399 = vst.msk [vmem:[#allocation2 + $0x48] sm:$0xff] %vm389, %v382
  %400 = vst.msk [vmem:[#allocation2 + $0x50] sm:$0xff] %vm389, %v383
  %401 = vst.msk [vmem:[#allocation2 + $0x58] sm:$0xff] %vm389, %v384
  %402 = vst.msk [vmem:[#allocation2 + $0x60] sm:$0xff] %vm389, %v385
  %403 = vst.msk [vmem:[#allocation2 + $0x68] sm:$0xff] %vm389, %v386
  %404 = vst.msk [vmem:[#allocation2 + $0x70] sm:$0xff] %vm389, %v387
  %405 = vst.msk [vmem:[#allocation2 + $0x78] sm:$0xff] %vm389, %v388
  // Predicated region
  $region18: #{spatial_path_forward.3} parent=0 // pred_check
    %p406 = pneg %p15
  $region19: #{spatial_path_forward.3} parent=0 // pred_check_branch
    %408 = sbr.rel (%p406) target = $region21
  $region20: #{spatial_path_forward.3} parent=0 // pred_region
    %v409 = vld [vmem:[#allocation2] sm:$0xff]
    %v410 = vld [vmem:[#allocation2 + $0x8] sm:$0xff]
    %v411 = vld [vmem:[#allocation2 + $0x10] sm:$0xff]
    %v412 = vld [vmem:[#allocation2 + $0x18] sm:$0xff]
    %v413 = vld [vmem:[#allocation2 + $0x20] sm:$0xff]
    %v414 = vld [vmem:[#allocation2 + $0x28] sm:$0xff]
    %v415 = vld [vmem:[#allocation2 + $0x30] sm:$0xff]
    %v416 = vld [vmem:[#allocation2 + $0x38] sm:$0xff]
    %v417 = vld [vmem:[#allocation2 + $0x40] sm:$0xff]
    %v418 = vld [vmem:[#allocation2 + $0x48] sm:$0xff]
    %v419 = vld [vmem:[#allocation2 + $0x50] sm:$0xff]
    %v420 = vld [vmem:[#allocation2 + $0x58] sm:$0xff]
    %v421 = vld [vmem:[#allocation2 + $0x60] sm:$0xff]
    %v422 = vld [vmem:[#allocation2 + $0x68] sm:$0xff]
    %v423 = vld [vmem:[#allocation2 + $0x70] sm:$0xff]
    %v424 = vld [vmem:[#allocation2 + $0x78] sm:$0xff]
    %v425 = vld [vmem:[%s2] sm:$0x1]
    %v427 = vlaneseq
    %v428 = vshrl.u32 %v427, 7
    %v429 = vsub.s32 0, %v428
    %v430 = vrot.slane %v425, %v429
    %v432 = vadd.f32 %v409, %v430
    %v433 = vadd.f32 %v410, %v430
    %v434 = vadd.f32 %v411, %v430
    %v435 = vadd.f32 %v412, %v430
    %v436 = vadd.f32 %v413, %v430
    %v437 = vadd.f32 %v414, %v430
    %v438 = vadd.f32 %v415, %v430
    %v439 = vadd.f32 %v416, %v430
    %v440 = vadd.f32 %v417, %v430
    %v441 = vadd.f32 %v418, %v430
    %v442 = vadd.f32 %v419, %v430
    %v443 = vadd.f32 %v420, %v430
    %v444 = vadd.f32 %v421, %v430
    %v445 = vadd.f32 %v422, %v430
    %v446 = vadd.f32 %v423, %v430
    %v447 = vadd.f32 %v424, %v430
    %v448 = vmax.f32 %v432, 0.0
    %v449 = vmax.f32 %v433, 0.0
    %v450 = vmax.f32 %v434, 0.0
    %v451 = vmax.f32 %v435, 0.0
    %v452 = vmax.f32 %v436, 0.0
    %v453 = vmax.f32 %v437, 0.0
    %v454 = vmax.f32 %v438, 0.0
    %v455 = vmax.f32 %v439, 0.0
    %v456 = vmax.f32 %v440, 0.0
    %v457 = vmax.f32 %v441, 0.0
    %v458 = vmax.f32 %v442, 0.0
    %v459 = vmax.f32 %v443, 0.0
    %v460 = vmax.f32 %v444, 0.0
    %v461 = vmax.f32 %v445, 0.0
    %v462 = vmax.f32 %v446, 0.0
    %v463 = vmax.f32 %v447, 0.0
    %v464 = vpack.c.bf16 %v449, %v448
    %v465 = vpack.c.bf16 %v451, %v450
    %v466 = vpack.c.bf16 %v453, %v452
    %v467 = vpack.c.bf16 %v455, %v454
    %v468 = vpack.c.bf16 %v457, %v456
    %v469 = vpack.c.bf16 %v459, %v458
    %v470 = vpack.c.bf16 %v461, %v460
    %v471 = vpack.c.bf16 %v463, %v462
    %v480 = vunpack.c.l.b16 %v464
    %v481 = vunpack.c.h.b16 %v464
    %v482 = vunpack.c.l.b16 %v465
    %v483 = vunpack.c.h.b16 %v465
    %v484 = vunpack.c.l.b16 %v466
    %v485 = vunpack.c.h.b16 %v466
    %v486 = vunpack.c.l.b16 %v467
    %v487 = vunpack.c.h.b16 %v467
    %v488 = vunpack.c.l.b16 %v468
    %v489 = vunpack.c.h.b16 %v468
    %v490 = vunpack.c.l.b16 %v469
    %v491 = vunpack.c.h.b16 %v469
    %v492 = vunpack.c.l.b16 %v470
    %v493 = vunpack.c.h.b16 %v470
    %v494 = vunpack.c.l.b16 %v471
    %v495 = vunpack.c.h.b16 %v471
    %v496 = vpack.c.b16 %v480, %v480
    %v497 = vpack.c.b16 %v481, %v481
    %v498 = vpack.c.b16 %v482, %v482
    %v499 = vpack.c.b16 %v483, %v483
    %v500 = vpack.c.b16 %v484, %v484
    %v501 = vpack.c.b16 %v485, %v485
    %v502 = vpack.c.b16 %v486, %v486
    %v503 = vpack.c.b16 %v487, %v487
    %v504 = vpack.c.b16 %v488, %v488
    %v505 = vpack.c.b16 %v489, %v489
    %v506 = vpack.c.b16 %v490, %v490
    %v507 = vpack.c.b16 %v491, %v491
    %v508 = vpack.c.b16 %v492, %v492
    %v509 = vpack.c.b16 %v493, %v493
    %v510 = vpack.c.b16 %v494, %v494
    %v511 = vpack.c.b16 %v495, %v495
    %vm528 = vcmask 519168
    %529 = vst.msk [vmem:[%s3] sm:$0xf] %vm528, %v496
    %530 = vst.msk [vmem:[%s3 + $0x4] sm:$0xf] %vm528, %v497
    %531 = vst.msk [vmem:[%s3 + $0x8] sm:$0xf] %vm528, %v498
    %532 = vst.msk [vmem:[%s3 + $0xc] sm:$0xf] %vm528, %v499
    %533 = vst.msk [vmem:[%s3 + $0x10] sm:$0xf] %vm528, %v500
    %534 = vst.msk [vmem:[%s3 + $0x14] sm:$0xf] %vm528, %v501
    %535 = vst.msk [vmem:[%s3 + $0x18] sm:$0xf] %vm528, %v502
    %536 = vst.msk [vmem:[%s3 + $0x1c] sm:$0xf] %vm528, %v503
    %537 = vst.msk [vmem:[%s3 + $0x20] sm:$0xf] %vm528, %v504
    %538 = vst.msk [vmem:[%s3 + $0x24] sm:$0xf] %vm528, %v505
    %539 = vst.msk [vmem:[%s3 + $0x28] sm:$0xf] %vm528, %v506
    %540 = vst.msk [vmem:[%s3 + $0x2c] sm:$0xf] %vm528, %v507
    %541 = vst.msk [vmem:[%s3 + $0x30] sm:$0xf] %vm528, %v508
    %542 = vst.msk [vmem:[%s3 + $0x34] sm:$0xf] %vm528, %v509
    %543 = vst.msk [vmem:[%s3 + $0x38] sm:$0xf] %vm528, %v510
    %544 = vst.msk [vmem:[%s3 + $0x3c] sm:$0xf] %vm528, %v511
  $region21: #{spatial_path_forward.3} parent=0 // pred_fallthru
    _
  // Predicated region
  $region22: #{spatial_path_forward.3} parent=0 // pred_check
    _
  $region23: #{spatial_path_forward.3} parent=0 // pred_check_branch
    %546 = sbr.rel (0) target = $region25
  $region24: #{spatial_path_forward.3} parent=0 // pred_region
    _
  $region25: #{spatial_path_forward.3} parent=0 // pred_fallthru
    _
  // Predicated region
  $region26: #{spatial_path_forward.3} parent=0 // pred_check
    _
  $region27: #{spatial_path_forward.3} parent=0 // pred_check_branch
    %548 = sbr.rel (0) target = $region29
  $region28: #{spatial_path_forward.3} parent=0 // pred_region
    _
  $region29: #{spatial_path_forward.3} parent=0 // pred_fallthru
    _

// kernel: spatial_path_forward.4
$region0: #{spatial_path_forward.4}
  #allocation0 [shape = 'u32[]', space=smem, size = 0x4, offset = 0x4, fixed_abs, tag = 'smem constant byte address 0x4 - core index']
  #allocation1 [shape = 'u32[144,128]{1,0:T(1,128)}', space=vmem, size = 0x12000, scoped, tag = 'internal scratch']
  #allocation2 [shape = 'f32[32,64]{1,0:T(8,128)}', space=vmem, size = 0x4000, scoped, tag = 'scratch operand']
  %s0 = inlined_call_operand.vmem [shape: bf16[32,640], index: 0, kind: input, shape index: {}]
  %s1 = inlined_call_operand.vmem [shape: bf16[640,64], index: 1, kind: input, shape index: {}]
  %s2 = inlined_call_operand.vmem [shape: f32[1,64], index: 2, kind: input, shape index: {}]
  %s3 = inlined_call_operand.vmem [shape: bf16[32,64], index: 3, kind: output, shape index: {}]
  %s4 = sld [smem:[#allocation0]]
  $region30: #{spatial_path_forward.4} parent=0
    _
  %s6 = ssub.s32 1, %s4
  %s7 = scalar_select 0, %s6, %s4
  // Predicated region
  $region2: #{spatial_path_forward.4} parent=0 // pred_check
    _
  $region3: #{spatial_path_forward.4} parent=0 // pred_check_branch
    %9 = sbr.rel (0) target = $region5
  $region4: #{spatial_path_forward.4} parent=0 // pred_region
    _
  $region5: #{spatial_path_forward.4} parent=0 // pred_fallthru
    _
  // Predicated region
  $region6: #{spatial_path_forward.4} parent=0 // pred_check
    _
  $region7: #{spatial_path_forward.4} parent=0 // pred_check_branch
    %11 = sbr.rel (0) target = $region9
  $region8: #{spatial_path_forward.4} parent=0 // pred_region
    _
  $region9: #{spatial_path_forward.4} parent=0 // pred_fallthru
    _
  // Predicated region
  $region10: #{spatial_path_forward.4} parent=0 // pred_check
    _
  $region11: #{spatial_path_forward.4} parent=0 // pred_check_branch
    %13 = sbr.rel (0) target = $region13
  $region12: #{spatial_path_forward.4} parent=0 // pred_region
    _
  $region13: #{spatial_path_forward.4} parent=0 // pred_fallthru
    _
  %p15 = scmp.eq.s32.totalorder 0, 0
  // Predicated region
  $region14: #{spatial_path_forward.4} parent=0 // pred_check
    %p16 = pneg %p15
  $region15: #{spatial_path_forward.4} parent=0 // pred_check_branch
    %18 = sbr.rel (%p16) target = $region17
  $region16: #{spatial_path_forward.4} parent=0 // pred_region
    %vm19 = vcmask 523264
    %20 = vst.msk [vmem:[#allocation2] sm:$0xff] %vm19, 0.0
    %21 = vst.msk [vmem:[#allocation2 + $0x8] sm:$0xff] %vm19, 0.0
    %22 = vst.msk [vmem:[#allocation2 + $0x10] sm:$0xff] %vm19, 0.0
    %23 = vst.msk [vmem:[#allocation2 + $0x18] sm:$0xff] %vm19, 0.0
  $region17: #{spatial_path_forward.4} parent=0 // pred_fallthru
    _
  %v24 = vld [vmem:[#allocation2] sm:$0xff]
  %v25 = vld [vmem:[#allocation2 + $0x8] sm:$0xff]
  %v26 = vld [vmem:[#allocation2 + $0x10] sm:$0xff]
  %v27 = vld [vmem:[#allocation2 + $0x18] sm:$0xff]
  %v28 = vld [vmem:[%s0] sm:$0xff]
  %v29 = vld [vmem:[%s0 + $0x8] sm:$0xff]
  %v30 = vld [vmem:[%s0 + $0x10] sm:$0xf]
  %v31 = vld [vmem:[%s0 + $0x14] sm:$0xff]
  %v32 = vld [vmem:[%s0 + $0x1c] sm:$0xff]
  %v33 = vld [vmem:[%s0 + $0x24] sm:$0xf]
  %v34 = vld [vmem:[%s0 + $0x28] sm:$0xff]
  %v35 = vld [vmem:[%s0 + $0x30] sm:$0xff]
  %v36 = vld [vmem:[%s0 + $0x38] sm:$0xf]
  %v37 = vld [vmem:[%s0 + $0x3c] sm:$0xff]
  %v38 = vld [vmem:[%s0 + $0x44] sm:$0xff]
  %v39 = vld [vmem:[%s0 + $0x4c] sm:$0xf]
  %v40 = vld [vmem:[%s1] sm:$0xf]
  %v41 = vld [vmem:[%s1 + $0x4] sm:$0xf]
  %v42 = vld [vmem:[%s1 + $0x8] sm:$0xf]
  %v43 = vld [vmem:[%s1 + $0xc] sm:$0xf]
  %v44 = vld [vmem:[%s1 + $0x10] sm:$0xf]
  %v45 = vld [vmem:[%s1 + $0x14] sm:$0xf]
  %v46 = vld [vmem:[%s1 + $0x18] sm:$0xf]
  %v47 = vld [vmem:[%s1 + $0x1c] sm:$0xf]
  %v48 = vld [vmem:[%s1 + $0x20] sm:$0xf]
  %v49 = vld [vmem:[%s1 + $0x24] sm:$0xf]
  %v50 = vld [vmem:[%s1 + $0x28] sm:$0xf]
  %v51 = vld [vmem:[%s1 + $0x2c] sm:$0xf]
  %v52 = vld [vmem:[%s1 + $0x30] sm:$0xf]
  %v53 = vld [vmem:[%s1 + $0x34] sm:$0xf]
  %v54 = vld [vmem:[%s1 + $0x38] sm:$0xf]
  %v55 = vld [vmem:[%s1 + $0x3c] sm:$0xf]
  %v56 = vld [vmem:[%s1 + $0x40] sm:$0xf]
  %v57 = vld [vmem:[%s1 + $0x44] sm:$0xf]
  %v58 = vld [vmem:[%s1 + $0x48] sm:$0xf]
  %v59 = vld [vmem:[%s1 + $0x4c] sm:$0xf]
  %v60 = vld [vmem:[%s1 + $0x50] sm:$0xf]
  %v61 = vld [vmem:[%s1 + $0x54] sm:$0xf]
  %v62 = vld [vmem:[%s1 + $0x58] sm:$0xf]
  %v63 = vld [vmem:[%s1 + $0x5c] sm:$0xf]
  %v64 = vld [vmem:[%s1 + $0x60] sm:$0xf]
  %v65 = vld [vmem:[%s1 + $0x64] sm:$0xf]
  %v66 = vld [vmem:[%s1 + $0x68] sm:$0xf]
  %v67 = vld [vmem:[%s1 + $0x6c] sm:$0xf]
  %v68 = vld [vmem:[%s1 + $0x70] sm:$0xf]
  %v69 = vld [vmem:[%s1 + $0x74] sm:$0xf]
  %v70 = vld [vmem:[%s1 + $0x78] sm:$0xf]
  %v71 = vld [vmem:[%s1 + $0x7c] sm:$0xf]
  %v72 = vld [vmem:[%s1 + $0x80] sm:$0xf]
  %v73 = vld [vmem:[%s1 + $0x84] sm:$0xf]
  %v74 = vld [vmem:[%s1 + $0x88] sm:$0xf]
  %v75 = vld [vmem:[%s1 + $0x8c] sm:$0xf]
  %v76 = vld [vmem:[%s1 + $0x90] sm:$0xf]
  %v77 = vld [vmem:[%s1 + $0x94] sm:$0xf]
  %v78 = vld [vmem:[%s1 + $0x98] sm:$0xf]
  %v79 = vld [vmem:[%s1 + $0x9c] sm:$0xf]
  %v80 = vld [vmem:[%s1 + $0xa0] sm:$0xf]
  %v81 = vld [vmem:[%s1 + $0xa4] sm:$0xf]
  %v82 = vld [vmem:[%s1 + $0xa8] sm:$0xf]
  %v83 = vld [vmem:[%s1 + $0xac] sm:$0xf]
  %v84 = vld [vmem:[%s1 + $0xb0] sm:$0xf]
  %v85 = vld [vmem:[%s1 + $0xb4] sm:$0xf]
  %v86 = vld [vmem:[%s1 + $0xb8] sm:$0xf]
  %v87 = vld [vmem:[%s1 + $0xbc] sm:$0xf]
  %v88 = vld [vmem:[%s1 + $0xc0] sm:$0xf]
  %v89 = vld [vmem:[%s1 + $0xc4] sm:$0xf]
  %v90 = vld [vmem:[%s1 + $0xc8] sm:$0xf]
  %v91 = vld [vmem:[%s1 + $0xcc] sm:$0xf]
  %v92 = vld [vmem:[%s1 + $0xd0] sm:$0xf]
  %v93 = vld [vmem:[%s1 + $0xd4] sm:$0xf]
  %v94 = vld [vmem:[%s1 + $0xd8] sm:$0xf]
  %v95 = vld [vmem:[%s1 + $0xdc] sm:$0xf]
  %v96 = vld [vmem:[%s1 + $0xe0] sm:$0xf]
  %v97 = vld [vmem:[%s1 + $0xe4] sm:$0xf]
  %v98 = vld [vmem:[%s1 + $0xe8] sm:$0xf]
  %v99 = vld [vmem:[%s1 + $0xec] sm:$0xf]
  %v100 = vld [vmem:[%s1 + $0xf0] sm:$0xf]
  %v101 = vld [vmem:[%s1 + $0xf4] sm:$0xf]
  %v102 = vld [vmem:[%s1 + $0xf8] sm:$0xf]
  %v103 = vld [vmem:[%s1 + $0xfc] sm:$0xf]
  %v104 = vld [vmem:[%s1 + $0x100] sm:$0xf]
  %v105 = vld [vmem:[%s1 + $0x104] sm:$0xf]
  %v106 = vld [vmem:[%s1 + $0x108] sm:$0xf]
  %v107 = vld [vmem:[%s1 + $0x10c] sm:$0xf]
  %v108 = vld [vmem:[%s1 + $0x110] sm:$0xf]
  %v109 = vld [vmem:[%s1 + $0x114] sm:$0xf]
  %v110 = vld [vmem:[%s1 + $0x118] sm:$0xf]
  %v111 = vld [vmem:[%s1 + $0x11c] sm:$0xf]
  %v112 = vld [vmem:[%s1 + $0x120] sm:$0xf]
  %v113 = vld [vmem:[%s1 + $0x124] sm:$0xf]
  %v114 = vld [vmem:[%s1 + $0x128] sm:$0xf]
  %v115 = vld [vmem:[%s1 + $0x12c] sm:$0xf]
  %v116 = vld [vmem:[%s1 + $0x130] sm:$0xf]
  %v117 = vld [vmem:[%s1 + $0x134] sm:$0xf]
  %v118 = vld [vmem:[%s1 + $0x138] sm:$0xf]
  %v119 = vld [vmem:[%s1 + $0x13c] sm:$0xf]
  %v132 = vunpack.c.l.b16 %v28
  %v133 = vunpack.c.h.b16 %v28
  %v134 = vunpack.c.l.b16 %v29
  %v135 = vunpack.c.h.b16 %v29
  %v136 = vunpack.c.l.b16 %v30
  %v137 = vunpack.c.l.b16 %v31
  %v138 = vunpack.c.h.b16 %v31
  %v139 = vunpack.c.l.b16 %v32
  %v140 = vunpack.c.h.b16 %v32
  %v141 = vunpack.c.l.b16 %v33
  %v142 = vunpack.c.l.b16 %v34
  %v143 = vunpack.c.h.b16 %v34
  %v144 = vunpack.c.l.b16 %v35
  %v145 = vunpack.c.h.b16 %v35
  %v146 = vunpack.c.l.b16 %v36
  %v147 = vunpack.c.l.b16 %v37
  %v148 = vunpack.c.h.b16 %v37
  %v149 = vunpack.c.l.b16 %v38
  %v150 = vunpack.c.h.b16 %v38
  %v151 = vunpack.c.l.b16 %v39
  %v152 = vpack.c.b16 %v137, %v132
  %v153 = vpack.c.b16 %v138, %v133
  %v154 = vpack.c.b16 %v139, %v134
  %v155 = vpack.c.b16 %v140, %v135
  %v156 = vpack.c.b16 %v141, %v136
  %v157 = vpack.c.b16 %v147, %v142
  %v158 = vpack.c.b16 %v148, %v143
  %v159 = vpack.c.b16 %v149, %v144
  %v160 = vpack.c.b16 %v150, %v145
  %v161 = vpack.c.b16 %v151, %v146
  %v252 = vunpack.c.l.b16 %v40
  %v253 = vunpack.c.l.b16 %v41
  %v254 = vunpack.c.l.b16 %v42
  %v255 = vunpack.c.l.b16 %v43
  %v256 = vunpack.c.l.b16 %v44
  %v257 = vunpack.c.l.b16 %v45
  %v258 = vunpack.c.l.b16 %v46
  %v259 = vunpack.c.l.b16 %v47
  %v260 = vunpack.c.l.b16 %v48
  %v261 = vunpack.c.l.b16 %v49
  %v262 = vunpack.c.l.b16 %v50
  %v263 = vunpack.c.l.b16 %v51
  %v264 = vunpack.c.l.b16 %v52
  %v265 = vunpack.c.l.b16 %v53
  %v266 = vunpack.c.l.b16 %v54
  %v267 = vunpack.c.l.b16 %v55
  %v268 = vunpack.c.l.b16 %v56
  %v269 = vunpack.c.l.b16 %v57
  %v270 = vunpack.c.l.b16 %v58
  %v271 = vunpack.c.l.b16 %v59
  %v272 = vunpack.c.l.b16 %v60
  %v273 = vunpack.c.l.b16 %v61
  %v274 = vunpack.c.l.b16 %v62
  %v275 = vunpack.c.l.b16 %v63
  %v276 = vunpack.c.l.b16 %v64
  %v277 = vunpack.c.l.b16 %v65
  %v278 = vunpack.c.l.b16 %v66
  %v279 = vunpack.c.l.b16 %v67
  %v280 = vunpack.c.l.b16 %v68
  %v281 = vunpack.c.l.b16 %v69
  %v282 = vunpack.c.l.b16 %v70
  %v283 = vunpack.c.l.b16 %v71
  %v284 = vunpack.c.l.b16 %v72
  %v285 = vunpack.c.l.b16 %v73
  %v286 = vunpack.c.l.b16 %v74
  %v287 = vunpack.c.l.b16 %v75
  %v288 = vunpack.c.l.b16 %v76
  %v289 = vunpack.c.l.b16 %v77
  %v290 = vunpack.c.l.b16 %v78
  %v291 = vunpack.c.l.b16 %v79
  %v292 = vunpack.c.l.b16 %v80
  %v293 = vunpack.c.l.b16 %v81
  %v294 = vunpack.c.l.b16 %v82
  %v295 = vunpack.c.l.b16 %v83
  %v296 = vunpack.c.l.b16 %v84
  %v297 = vunpack.c.l.b16 %v85
  %v298 = vunpack.c.l.b16 %v86
  %v299 = vunpack.c.l.b16 %v87
  %v300 = vunpack.c.l.b16 %v88
  %v301 = vunpack.c.l.b16 %v89
  %v302 = vunpack.c.l.b16 %v90
  %v303 = vunpack.c.l.b16 %v91
  %v304 = vunpack.c.l.b16 %v92
  %v305 = vunpack.c.l.b16 %v93
  %v306 = vunpack.c.l.b16 %v94
  %v307 = vunpack.c.l.b16 %v95
  %v308 = vunpack.c.l.b16 %v96
  %v309 = vunpack.c.l.b16 %v97
  %v310 = vunpack.c.l.b16 %v98
  %v311 = vunpack.c.l.b16 %v99
  %v312 = vunpack.c.l.b16 %v100
  %v313 = vunpack.c.l.b16 %v101
  %v314 = vunpack.c.l.b16 %v102
  %v315 = vunpack.c.l.b16 %v103
  %v316 = vunpack.c.l.b16 %v104
  %v317 = vunpack.c.l.b16 %v105
  %v318 = vunpack.c.l.b16 %v106
  %v319 = vunpack.c.l.b16 %v107
  %v320 = vunpack.c.l.b16 %v108
  %v321 = vunpack.c.l.b16 %v109
  %v322 = vunpack.c.l.b16 %v110
  %v323 = vunpack.c.l.b16 %v111
  %v324 = vunpack.c.l.b16 %v112
  %v325 = vunpack.c.l.b16 %v113
  %v326 = vunpack.c.l.b16 %v114
  %v327 = vunpack.c.l.b16 %v115
  %v328 = vunpack.c.l.b16 %v116
  %v329 = vunpack.c.l.b16 %v117
  %v330 = vunpack.c.l.b16 %v118
  %v331 = vunpack.c.l.b16 %v119
  %v332 = vpack.c.b16 %v253, %v252
  %v333 = vpack.c.b16 %v255, %v254
  %v334 = vpack.c.b16 %v257, %v256
  %v335 = vpack.c.b16 %v259, %v258
  %v336 = vpack.c.b16 %v261, %v260
  %v337 = vpack.c.b16 %v263, %v262
  %v338 = vpack.c.b16 %v265, %v264
  %v339 = vpack.c.b16 %v267, %v266
  %v340 = vpack.c.b16 %v269, %v268
  %v341 = vpack.c.b16 %v271, %v270
  %v342 = vpack.c.b16 %v273, %v272
  %v343 = vpack.c.b16 %v275, %v274
  %v344 = vpack.c.b16 %v277, %v276
  %v345 = vpack.c.b16 %v279, %v278
  %v346 = vpack.c.b16 %v281, %v280
  %v347 = vpack.c.b16 %v283, %v282
  %v348 = vpack.c.b16 %v285, %v284
  %v349 = vpack.c.b16 %v287, %v286
  %v350 = vpack.c.b16 %v289, %v288
  %v351 = vpack.c.b16 %v291, %v290
  %v352 = vpack.c.b16 %v293, %v292
  %v353 = vpack.c.b16 %v295, %v294
  %v354 = vpack.c.b16 %v297, %v296
  %v355 = vpack.c.b16 %v299, %v298
  %v356 = vpack.c.b16 %v301, %v300
  %v357 = vpack.c.b16 %v303, %v302
  %v358 = vpack.c.b16 %v305, %v304
  %v359 = vpack.c.b16 %v307, %v306
  %v360 = vpack.c.b16 %v309, %v308
  %v361 = vpack.c.b16 %v311, %v310
  %v362 = vpack.c.b16 %v313, %v312
  %v363 = vpack.c.b16 %v315, %v314
  %v364 = vpack.c.b16 %v317, %v316
  %v365 = vpack.c.b16 %v319, %v318
  %v366 = vpack.c.b16 %v321, %v320
  %v367 = vpack.c.b16 %v323, %v322
  %v368 = vpack.c.b16 %v325, %v324
  %v369 = vpack.c.b16 %v327, %v326
  %v370 = vpack.c.b16 %v329, %v328
  %v371 = vpack.c.b16 %v331, %v330
  %412 = vmatprep.subr.bf16.mxu0 0
  %413 = vmatpush1.bf16.msra.mxu0 %v332
  %414 = vmatprep.subr.bf16.mxu0 0
  %415 = vmatpush1.bf16.msra.mxu0 %v333
  %416 = vmatprep.subr.bf16.mxu0 0
  %417 = vmatpush1.bf16.msra.mxu0 %v334
  %418 = vmatprep.subr.bf16.mxu0 0
  %419 = vmatpush1.bf16.msra.mxu0 %v335
  %420 = vmatprep.subr.bf16.mxu0 0
  %421 = vmatpush1.bf16.msra.mxu0 %v336
  %422 = vmatprep.subr.bf16.mxu0 0
  %423 = vmatpush1.bf16.msra.mxu0 %v337
  %424 = vmatprep.subr.bf16.mxu0 0
  %425 = vmatpush1.bf16.msra.mxu0 %v338
  %426 = vmatprep.subr.bf16.mxu0 0
  %427 = vmatpush1.bf16.msra.mxu0 %v339
  %428 = vmatprep.subr.bf16.mxu0 0
  %429 = vmatpush1.bf16.msra.mxu0 %v340
  %430 = vmatprep.subr.bf16.mxu0 0
  %431 = vmatpush1.bf16.msra.mxu0 %v341
  %432 = vmatprep.subr.bf16.mxu0 0
  %433 = vmatpush1.bf16.msra.mxu0 %v342
  %434 = vmatprep.subr.bf16.mxu0 0
  %435 = vmatpush1.bf16.msra.mxu0 %v343
  %436 = vmatprep.subr.bf16.mxu0 0
  %437 = vmatpush1.bf16.msra.mxu0 %v344
  %438 = vmatprep.subr.bf16.mxu0 0
  %439 = vmatpush1.bf16.msra.mxu0 %v345
  %440 = vmatprep.subr.bf16.mxu0 0
  %441 = vmatpush1.bf16.msra.mxu0 %v346
  %442 = vmatprep.subr.bf16.mxu0 0
  %443 = vmatpush1.bf16.msra.mxu0 %v347
  %444 = vmatprep.mubr.bf16.mxu0 %v153
  %445 = vmatmul.mubr.bf16.gmra.mrb[0].mxu0 %v152
  %v446 = vpop.f32.mrb[0].mxu0
  %v447 = vadd.f32 0.0, %v446
  %v448 = vpop.f32.mrb[0].mxu0
  %v449 = vpop.f32.mrb[0].mxu0
  %v450 = vadd.f32 0.0, %v449
  %v451 = vpop.f32.mrb[0].mxu0
  %452 = vmatprep.mubr.bf16.mxu0 %v158
  %453 = vmatmul.mubr.bf16.gmra.mrb[0].mxu0 %v157
  %v454 = vpop.f32.mrb[0].mxu0
  %v455 = vadd.f32 0.0, %v454
  %v456 = vpop.f32.mrb[0].mxu0
  %v457 = vpop.f32.mrb[0].mxu0
  %v458 = vadd.f32 0.0, %v457
  %v459 = vpop.f32.mrb[0].mxu0
  %460 = vdwg.mxu0
  %461 = vmatprep.subr.bf16.mxu0 0
  %462 = vmatpush1.bf16.msra.mxu0 %v348
  %463 = vmatprep.subr.bf16.mxu0 0
  %464 = vmatpush1.bf16.msra.mxu0 %v349
  %465 = vmatprep.subr.bf16.mxu0 0
  %466 = vmatpush1.bf16.msra.mxu0 %v350
  %467 = vmatprep.subr.bf16.mxu0 0
  %468 = vmatpush1.bf16.msra.mxu0 %v351
  %469 = vmatprep.subr.bf16.mxu0 0
  %470 = vmatpush1.bf16.msra.mxu0 %v352
  %471 = vmatprep.subr.bf16.mxu0 0
  %472 = vmatpush1.bf16.msra.mxu0 %v353
  %473 = vmatprep.subr.bf16.mxu0 0
  %474 = vmatpush1.bf16.msra.mxu0 %v354
  %475 = vmatprep.subr.bf16.mxu0 0
  %476 = vmatpush1.bf16.msra.mxu0 %v355
  %477 = vmatprep.subr.bf16.mxu0 0
  %478 = vmatpush1.bf16.msra.mxu0 %v356
  %479 = vmatprep.subr.bf16.mxu0 0
  %480 = vmatpush1.bf16.msra.mxu0 %v357
  %481 = vmatprep.subr.bf16.mxu0 0
  %482 = vmatpush1.bf16.msra.mxu0 %v358
  %483 = vmatprep.subr.bf16.mxu0 0
  %484 = vmatpush1.bf16.msra.mxu0 %v359
  %485 = vmatprep.subr.bf16.mxu0 0
  %486 = vmatpush1.bf16.msra.mxu0 %v360
  %487 = vmatprep.subr.bf16.mxu0 0
  %488 = vmatpush1.bf16.msra.mxu0 %v361
  %489 = vmatprep.subr.bf16.mxu0 0
  %490 = vmatpush1.bf16.msra.mxu0 %v362
  %491 = vmatprep.subr.bf16.mxu0 0
  %492 = vmatpush1.bf16.msra.mxu0 %v363
  %493 = vmatprep.mubr.bf16.mxu0 %v155
  %494 = vmatmul.mubr.bf16.gmra.mrb[0].mxu0 %v154
  %v495 = vpop.f32.mrb[0].mxu0
  %v496 = vadd.f32 %v447, %v495
  %v497 = vpop.f32.mrb[0].mxu0
  %v498 = vpop.f32.mrb[0].mxu0
  %v499 = vadd.f32 %v450, %v498
  %v500 = vpop.f32.mrb[0].mxu0
  %501 = vmatprep.mubr.bf16.mxu0 %v160
  %502 = vmatmul.mubr.bf16.gmra.mrb[0].mxu0 %v159
  %v503 = vpop.f32.mrb[0].mxu0
  %v504 = vadd.f32 %v455, %v503
  %v505 = vpop.f32.mrb[0].mxu0
  %v506 = vpop.f32.mrb[0].mxu0
  %v507 = vadd.f32 %v458, %v506
  %v508 = vpop.f32.mrb[0].mxu0
  %509 = vdwg.mxu0
  %510 = vmatprep.subr.bf16.mxu0 0
  %511 = vmatpush1.bf16.msra.mxu0 %v364
  %512 = vmatprep.subr.bf16.mxu0 0
  %513 = vmatpush1.bf16.msra.mxu0 %v365
  %514 = vmatprep.subr.bf16.mxu0 0
  %515 = vmatpush1.bf16.msra.mxu0 %v366
  %516 = vmatprep.subr.bf16.mxu0 0
  %517 = vmatpush1.bf16.msra.mxu0 %v367
  %518 = vmatprep.subr.bf16.mxu0 0
  %519 = vmatpush1.bf16.msra.mxu0 %v368
  %520 = vmatprep.subr.bf16.mxu0 0
  %521 = vmatpush1.bf16.msra.mxu0 %v369
  %522 = vmatprep.subr.bf16.mxu0 0
  %523 = vmatpush1.bf16.msra.mxu0 %v370
  %524 = vmatprep.subr.bf16.mxu0 0
  %525 = vmatpush1.bf16.msra.mxu0 %v371
  %526 = vmatprep.subr.bf16.mxu0 0
  %527 = vmatpush1.bf16.msra.mxu0 0
  %528 = vmatprep.subr.bf16.mxu0 0
  %529 = vmatpush1.bf16.msra.mxu0 0
  %530 = vmatprep.subr.bf16.mxu0 0
  %531 = vmatpush1.bf16.msra.mxu0 0
  %532 = vmatprep.subr.bf16.mxu0 0
  %533 = vmatpush1.bf16.msra.mxu0 0
  %534 = vmatprep.subr.bf16.mxu0 0
  %535 = vmatpush1.bf16.msra.mxu0 0
  %536 = vmatprep.subr.bf16.mxu0 0
  %537 = vmatpush1.bf16.msra.mxu0 0
  %538 = vmatprep.subr.bf16.mxu0 0
  %539 = vmatpush1.bf16.msra.mxu0 0
  %540 = vmatprep.subr.bf16.mxu0 0
  %541 = vmatpush1.bf16.msra.mxu0 0
  %542 = vmatprep.mubr.bf16.mxu0 0
  %543 = vmatmul.mubr.bf16.gmra.mrb[0].mxu0 %v156
  %v544 = vpop.f32.mrb[0].mxu0
  %v545 = vadd.f32 %v496, %v544
  %v546 = vpop.f32.mrb[0].mxu0
  %v547 = vpop.f32.mrb[0].mxu0
  %v548 = vadd.f32 %v499, %v547
  %v549 = vpop.f32.mrb[0].mxu0
  %550 = vmatprep.mubr.bf16.mxu0 0
  %551 = vmatmul.mubr.bf16.gmra.mrb[0].mxu0 %v161
  %v552 = vpop.f32.mrb[0].mxu0
  %v553 = vadd.f32 %v504, %v552
  %v554 = vpop.f32.mrb[0].mxu0
  %v555 = vpop.f32.mrb[0].mxu0
  %v556 = vadd.f32 %v507, %v555
  %v557 = vpop.f32.mrb[0].mxu0
  %558 = vdwg.mxu0
  %v559 = vadd.f32 %v24, %v545
  %v560 = vadd.f32 %v25, %v548
  %v561 = vadd.f32 %v26, %v553
  %v562 = vadd.f32 %v27, %v556
  %vm563 = vcmask 523264
  %564 = vst.msk [vmem:[#allocation2] sm:$0xff] %vm563, %v559
  %565 = vst.msk [vmem:[#allocation2 + $0x8] sm:$0xff] %vm563, %v560
  %566 = vst.msk [vmem:[#allocation2 + $0x10] sm:$0xff] %vm563, %v561
  %567 = vst.msk [vmem:[#allocation2 + $0x18] sm:$0xff] %vm563, %v562
  // Predicated region
  $region18: #{spatial_path_forward.4} parent=0 // pred_check
    %p568 = pneg %p15
  $region19: #{spatial_path_forward.4} parent=0 // pred_check_branch
    %570 = sbr.rel (%p568) target = $region21
  $region20: #{spatial_path_forward.4} parent=0 // pred_region
    %v571 = vld [vmem:[#allocation2] sm:$0xff]
    %v572 = vld [vmem:[#allocation2 + $0x8] sm:$0xff]
    %v573 = vld [vmem:[#allocation2 + $0x10] sm:$0xff]
    %v574 = vld [vmem:[#allocation2 + $0x18] sm:$0xff]
    %v575 = vld [vmem:[%s2] sm:$0x1]
    %v577 = vlaneseq
    %v578 = vshrl.u32 %v577, 7
    %v579 = vsub.s32 0, %v578
    %v580 = vrot.slane %v575, %v579
    %v582 = vadd.f32 %v571, %v580
    %v583 = vadd.f32 %v572, %v580
    %v584 = vadd.f32 %v573, %v580
    %v585 = vadd.f32 %v574, %v580
    %v586 = vmax.f32 %v582, 0.0
    %v587 = vmax.f32 %v583, 0.0
    %v588 = vmax.f32 %v584, 0.0
    %v589 = vmax.f32 %v585, 0.0
    %v590 = vpack.c.bf16 %v587, %v586
    %v591 = vpack.c.bf16 %v589, %v588
    %v594 = vunpack.c.l.b16 %v590
    %v595 = vunpack.c.h.b16 %v590
    %v596 = vunpack.c.l.b16 %v591
    %v597 = vunpack.c.h.b16 %v591
    %v598 = vpack.c.b16 %v594, %v594
    %v599 = vpack.c.b16 %v595, %v595
    %v600 = vpack.c.b16 %v596, %v596
    %v601 = vpack.c.b16 %v597, %v597
    %vm606 = vcmask 519168
    %607 = vst.msk [vmem:[%s3] sm:$0xf] %vm606, %v598
    %608 = vst.msk [vmem:[%s3 + $0x4] sm:$0xf] %vm606, %v599
    %609 = vst.msk [vmem:[%s3 + $0x8] sm:$0xf] %vm606, %v600
    %610 = vst.msk [vmem:[%s3 + $0xc] sm:$0xf] %vm606, %v601
  $region21: #{spatial_path_forward.4} parent=0 // pred_fallthru
    _
  // Predicated region
  $region22: #{spatial_path_forward.4} parent=0 // pred_check
    _
  $region23: #{spatial_path_forward.4} parent=0 // pred_check_branch
    %612 = sbr.rel (0) target = $region25
  $region24: #{spatial_path_forward.4} parent=0 // pred_region
    _
  $region25: #{spatial_path_forward.4} parent=0 // pred_fallthru
    _
  // Predicated region
  $region26: #{spatial_path_forward.4} parent=0 // pred_check
    _
  $region27: #{spatial_path_forward.4} parent=0 // pred_check_branch
    %614 = sbr.rel (0) target = $region29
  $region28: #{spatial_path_forward.4} parent=0 // pred_region
    _
  $region29: #{spatial_path_forward.4} parent=0 // pred_fallthru
    _

// kernel: spatial_path_forward.5
$region0: #{spatial_path_forward.5}
  #allocation0 [shape = 'u32[]', space=smem, size = 0x4, offset = 0x4, fixed_abs, tag = 'smem constant byte address 0x4 - core index']
  #allocation1 [shape = 'u32[144,128]{1,0:T(1,128)}', space=vmem, size = 0x12000, scoped, tag = 'internal scratch']
  #allocation2 [shape = 'f32[8,64]{1,0:T(8,128)}', space=vmem, size = 0x1000, scoped, tag = 'scratch operand']
  %s0 = inlined_call_operand.vmem [shape: bf16[8,640], index: 0, kind: input, shape index: {}]
  %s1 = inlined_call_operand.vmem [shape: bf16[640,64], index: 1, kind: input, shape index: {}]
  %s2 = inlined_call_operand.vmem [shape: f32[1,64], index: 2, kind: input, shape index: {}]
  %s3 = inlined_call_operand.vmem [shape: bf16[64,32], index: 3, kind: input, shape index: {}]
  %s4 = inlined_call_operand.vmem [shape: f32[1,32], index: 4, kind: input, shape index: {}]
  %s5 = inlined_call_operand.hbm [shape: f32[8,32], index: 5, kind: output, shape index: {}]
  %s6 = sld [smem:[#allocation0]]
  $region38: #{spatial_path_forward.5} parent=0
    _
  %s8 = ssub.s32 1, %s6
  %s9 = scalar_select 0, %s8, %s6
  $region1: #{spatial_path_forward.5} parent=0
    #allocation3 [shape = 'u8[4096]{0}', space=vmem, size = 0x1000, scoped, tag = 'output window, operand 0, single buffered']
    #allocation4 [shape = 's32[1]{0}', space=sflag, size = 0x4, scoped, tag = 'scoped memory for spatial_path_forward.5']
    %10 = vsyncpa [#allocation4], 0
    // Predicated region
    $region2: #{spatial_path_forward.5} parent=1 // pred_check
      _
    $region3: #{spatial_path_forward.5} parent=1 // pred_check_branch
      %12 = sbr.rel (0) target = $region5
    $region4: #{spatial_path_forward.5} parent=1 // pred_region
      _
    $region5: #{spatial_path_forward.5} parent=1 // pred_fallthru
      _
    // Predicated region
    $region6: #{spatial_path_forward.5} parent=1 // pred_check
      _
    $region7: #{spatial_path_forward.5} parent=1 // pred_check_branch
      %14 = sbr.rel (0) target = $region9
    $region8: #{spatial_path_forward.5} parent=1 // pred_region
      _
    $region9: #{spatial_path_forward.5} parent=1 // pred_fallthru
      _
    // Predicated region
    $region10: #{spatial_path_forward.5} parent=1 // pred_check
      _
    $region11: #{spatial_path_forward.5} parent=1 // pred_check_branch
      %16 = sbr.rel (0) target = $region13
    $region12: #{spatial_path_forward.5} parent=1 // pred_region
      _
    $region13: #{spatial_path_forward.5} parent=1 // pred_fallthru
      _
    // Predicated region
    $region14: #{spatial_path_forward.5} parent=1 // pred_check
      _
    $region15: #{spatial_path_forward.5} parent=1 // pred_check_branch
      %18 = sbr.rel (0) target = $region17
    $region16: #{spatial_path_forward.5} parent=1 // pred_region
      _
    $region17: #{spatial_path_forward.5} parent=1 // pred_fallthru
      _
    // Predicated region
    $region18: #{spatial_path_forward.5} parent=1 // pred_check
      _
    $region19: #{spatial_path_forward.5} parent=1 // pred_check_branch
      %20 = sbr.rel (0) target = $region21
    $region20: #{spatial_path_forward.5} parent=1 // pred_region
      _
    $region21: #{spatial_path_forward.5} parent=1 // pred_fallthru
      _
    %p22 = scmp.eq.s32.totalorder 0, 0
    // Predicated region
    $region22: #{spatial_path_forward.5} parent=1 // pred_check
      %p23 = pneg %p22
    $region23: #{spatial_path_forward.5} parent=1 // pred_check_branch
      %25 = sbr.rel (%p23) target = $region25
    $region24: #{spatial_path_forward.5} parent=1 // pred_region
      %vm26 = vcmask 523264
      %27 = vst.msk [vmem:[#allocation2] sm:$0xff] %vm26, 0.0
    $region25: #{spatial_path_forward.5} parent=1 // pred_fallthru
      _
    %v28 = vld [vmem:[#allocation2] sm:$0xff]
    %v29 = vld [vmem:[%s0] sm:$0xff]
    %v30 = vld [vmem:[%s0 + $0x8] sm:$0xff]
    %v31 = vld [vmem:[%s0 + $0x10] sm:$0xf]
    %v32 = vld [vmem:[%s1] sm:$0xf]
    %v33 = vld [vmem:[%s1 + $0x4] sm:$0xf]
    %v34 = vld [vmem:[%s1 + $0x8] sm:$0xf]
    %v35 = vld [vmem:[%s1 + $0xc] sm:$0xf]
    %v36 = vld [vmem:[%s1 + $0x10] sm:$0xf]
    %v37 = vld [vmem:[%s1 + $0x14] sm:$0xf]
    %v38 = vld [vmem:[%s1 + $0x18] sm:$0xf]
    %v39 = vld [vmem:[%s1 + $0x1c] sm:$0xf]
    %v40 = vld [vmem:[%s1 + $0x20] sm:$0xf]
    %v41 = vld [vmem:[%s1 + $0x24] sm:$0xf]
    %v42 = vld [vmem:[%s1 + $0x28] sm:$0xf]
    %v43 = vld [vmem:[%s1 + $0x2c] sm:$0xf]
    %v44 = vld [vmem:[%s1 + $0x30] sm:$0xf]
    %v45 = vld [vmem:[%s1 + $0x34] sm:$0xf]
    %v46 = vld [vmem:[%s1 + $0x38] sm:$0xf]
    %v47 = vld [vmem:[%s1 + $0x3c] sm:$0xf]
    %v48 = vld [vmem:[%s1 + $0x40] sm:$0xf]
    %v49 = vld [vmem:[%s1 + $0x44] sm:$0xf]
    %v50 = vld [vmem:[%s1 + $0x48] sm:$0xf]
    %v51 = vld [vmem:[%s1 + $0x4c] sm:$0xf]
    %v52 = vld [vmem:[%s1 + $0x50] sm:$0xf]
    %v53 = vld [vmem:[%s1 + $0x54] sm:$0xf]
    %v54 = vld [vmem:[%s1 + $0x58] sm:$0xf]
    %v55 = vld [vmem:[%s1 + $0x5c] sm:$0xf]
    %v56 = vld [vmem:[%s1 + $0x60] sm:$0xf]
    %v57 = vld [vmem:[%s1 + $0x64] sm:$0xf]
    %v58 = vld [vmem:[%s1 + $0x68] sm:$0xf]
    %v59 = vld [vmem:[%s1 + $0x6c] sm:$0xf]
    %v60 = vld [vmem:[%s1 + $0x70] sm:$0xf]
    %v61 = vld [vmem:[%s1 + $0x74] sm:$0xf]
    %v62 = vld [vmem:[%s1 + $0x78] sm:$0xf]
    %v63 = vld [vmem:[%s1 + $0x7c] sm:$0xf]
    %v64 = vld [vmem:[%s1 + $0x80] sm:$0xf]
    %v65 = vld [vmem:[%s1 + $0x84] sm:$0xf]
    %v66 = vld [vmem:[%s1 + $0x88] sm:$0xf]
    %v67 = vld [vmem:[%s1 + $0x8c] sm:$0xf]
    %v68 = vld [vmem:[%s1 + $0x90] sm:$0xf]
    %v69 = vld [vmem:[%s1 + $0x94] sm:$0xf]
    %v70 = vld [vmem:[%s1 + $0x98] sm:$0xf]
    %v71 = vld [vmem:[%s1 + $0x9c] sm:$0xf]
    %v72 = vld [vmem:[%s1 + $0xa0] sm:$0xf]
    %v73 = vld [vmem:[%s1 + $0xa4] sm:$0xf]
    %v74 = vld [vmem:[%s1 + $0xa8] sm:$0xf]
    %v75 = vld [vmem:[%s1 + $0xac] sm:$0xf]
    %v76 = vld [vmem:[%s1 + $0xb0] sm:$0xf]
    %v77 = vld [vmem:[%s1 + $0xb4] sm:$0xf]
    %v78 = vld [vmem:[%s1 + $0xb8] sm:$0xf]
    %v79 = vld [vmem:[%s1 + $0xbc] sm:$0xf]
    %v80 = vld [vmem:[%s1 + $0xc0] sm:$0xf]
    %v81 = vld [vmem:[%s1 + $0xc4] sm:$0xf]
    %v82 = vld [vmem:[%s1 + $0xc8] sm:$0xf]
    %v83 = vld [vmem:[%s1 + $0xcc] sm:$0xf]
    %v84 = vld [vmem:[%s1 + $0xd0] sm:$0xf]
    %v85 = vld [vmem:[%s1 + $0xd4] sm:$0xf]
    %v86 = vld [vmem:[%s1 + $0xd8] sm:$0xf]
    %v87 = vld [vmem:[%s1 + $0xdc] sm:$0xf]
    %v88 = vld [vmem:[%s1 + $0xe0] sm:$0xf]
    %v89 = vld [vmem:[%s1 + $0xe4] sm:$0xf]
    %v90 = vld [vmem:[%s1 + $0xe8] sm:$0xf]
    %v91 = vld [vmem:[%s1 + $0xec] sm:$0xf]
    %v92 = vld [vmem:[%s1 + $0xf0] sm:$0xf]
    %v93 = vld [vmem:[%s1 + $0xf4] sm:$0xf]
    %v94 = vld [vmem:[%s1 + $0xf8] sm:$0xf]
    %v95 = vld [vmem:[%s1 + $0xfc] sm:$0xf]
    %v96 = vld [vmem:[%s1 + $0x100] sm:$0xf]
    %v97 = vld [vmem:[%s1 + $0x104] sm:$0xf]
    %v98 = vld [vmem:[%s1 + $0x108] sm:$0xf]
    %v99 = vld [vmem:[%s1 + $0x10c] sm:$0xf]
    %v100 = vld [vmem:[%s1 + $0x110] sm:$0xf]
    %v101 = vld [vmem:[%s1 + $0x114] sm:$0xf]
    %v102 = vld [vmem:[%s1 + $0x118] sm:$0xf]
    %v103 = vld [vmem:[%s1 + $0x11c] sm:$0xf]
    %v104 = vld [vmem:[%s1 + $0x120] sm:$0xf]
    %v105 = vld [vmem:[%s1 + $0x124] sm:$0xf]
    %v106 = vld [vmem:[%s1 + $0x128] sm:$0xf]
    %v107 = vld [vmem:[%s1 + $0x12c] sm:$0xf]
    %v108 = vld [vmem:[%s1 + $0x130] sm:$0xf]
    %v109 = vld [vmem:[%s1 + $0x134] sm:$0xf]
    %v110 = vld [vmem:[%s1 + $0x138] sm:$0xf]
    %v111 = vld [vmem:[%s1 + $0x13c] sm:$0xf]
    %v115 = vunpack.c.l.b16 %v29
    %v116 = vunpack.c.h.b16 %v29
    %v117 = vunpack.c.l.b16 %v30
    %v118 = vunpack.c.h.b16 %v30
    %v119 = vunpack.c.l.b16 %v31
    %v120 = vpack.c.b16 %v115, %v115
    %v121 = vpack.c.b16 %v116, %v116
    %v122 = vpack.c.b16 %v117, %v117
    %v123 = vpack.c.b16 %v118, %v118
    %v124 = vpack.c.b16 %v119, %v119
    %v210 = vunpack.c.l.b16 %v32
    %v211 = vunpack.c.l.b16 %v33
    %v212 = vunpack.c.l.b16 %v34
    %v213 = vunpack.c.l.b16 %v35
    %v214 = vunpack.c.l.b16 %v36
    %v215 = vunpack.c.l.b16 %v37
    %v216 = vunpack.c.l.b16 %v38
    %v217 = vunpack.c.l.b16 %v39
    %v218 = vunpack.c.l.b16 %v40
    %v219 = vunpack.c.l.b16 %v41
    %v220 = vunpack.c.l.b16 %v42
    %v221 = vunpack.c.l.b16 %v43
    %v222 = vunpack.c.l.b16 %v44
    %v223 = vunpack.c.l.b16 %v45
    %v224 = vunpack.c.l.b16 %v46
    %v225 = vunpack.c.l.b16 %v47
    %v226 = vunpack.c.l.b16 %v48
    %v227 = vunpack.c.l.b16 %v49
    %v228 = vunpack.c.l.b16 %v50
    %v229 = vunpack.c.l.b16 %v51
    %v230 = vunpack.c.l.b16 %v52
    %v231 = vunpack.c.l.b16 %v53
    %v232 = vunpack.c.l.b16 %v54
    %v233 = vunpack.c.l.b16 %v55
    %v234 = vunpack.c.l.b16 %v56
    %v235 = vunpack.c.l.b16 %v57
    %v236 = vunpack.c.l.b16 %v58
    %v237 = vunpack.c.l.b16 %v59
    %v238 = vunpack.c.l.b16 %v60
    %v239 = vunpack.c.l.b16 %v61
    %v240 = vunpack.c.l.b16 %v62
    %v241 = vunpack.c.l.b16 %v63
    %v242 = vunpack.c.l.b16 %v64
    %v243 = vunpack.c.l.b16 %v65
    %v244 = vunpack.c.l.b16 %v66
    %v245 = vunpack.c.l.b16 %v67
    %v246 = vunpack.c.l.b16 %v68
    %v247 = vunpack.c.l.b16 %v69
    %v248 = vunpack.c.l.b16 %v70
    %v249 = vunpack.c.l.b16 %v71
    %v250 = vunpack.c.l.b16 %v72
    %v251 = vunpack.c.l.b16 %v73
    %v252 = vunpack.c.l.b16 %v74
    %v253 = vunpack.c.l.b16 %v75
    %v254 = vunpack.c.l.b16 %v76
    %v255 = vunpack.c.l.b16 %v77
    %v256 = vunpack.c.l.b16 %v78
    %v257 = vunpack.c.l.b16 %v79
    %v258 = vunpack.c.l.b16 %v80
    %v259 = vunpack.c.l.b16 %v81
    %v260 = vunpack.c.l.b16 %v82
    %v261 = vunpack.c.l.b16 %v83
    %v262 = vunpack.c.l.b16 %v84
    %v263 = vunpack.c.l.b16 %v85
    %v264 = vunpack.c.l.b16 %v86
    %v265 = vunpack.c.l.b16 %v87
    %v266 = vunpack.c.l.b16 %v88
    %v267 = vunpack.c.l.b16 %v89
    %v268 = vunpack.c.l.b16 %v90
    %v269 = vunpack.c.l.b16 %v91
    %v270 = vunpack.c.l.b16 %v92
    %v271 = vunpack.c.l.b16 %v93
    %v272 = vunpack.c.l.b16 %v94
    %v273 = vunpack.c.l.b16 %v95
    %v274 = vunpack.c.l.b16 %v96
    %v275 = vunpack.c.l.b16 %v97
    %v276 = vunpack.c.l.b16 %v98
    %v277 = vunpack.c.l.b16 %v99
    %v278 = vunpack.c.l.b16 %v100
    %v279 = vunpack.c.l.b16 %v101
    %v280 = vunpack.c.l.b16 %v102
    %v281 = vunpack.c.l.b16 %v103
    %v282 = vunpack.c.l.b16 %v104
    %v283 = vunpack.c.l.b16 %v105
    %v284 = vunpack.c.l.b16 %v106
    %v285 = vunpack.c.l.b16 %v107
    %v286 = vunpack.c.l.b16 %v108
    %v287 = vunpack.c.l.b16 %v109
    %v288 = vunpack.c.l.b16 %v110
    %v289 = vunpack.c.l.b16 %v111
    %v290 = vpack.c.b16 %v211, %v210
    %v291 = vpack.c.b16 %v213, %v212
    %v292 = vpack.c.b16 %v215, %v214
    %v293 = vpack.c.b16 %v217, %v216
    %v294 = vpack.c.b16 %v219, %v218
    %v295 = vpack.c.b16 %v221, %v220
    %v296 = vpack.c.b16 %v223, %v222
    %v297 = vpack.c.b16 %v225, %v224
    %v298 = vpack.c.b16 %v227, %v226
    %v299 = vpack.c.b16 %v229, %v228
    %v300 = vpack.c.b16 %v231, %v230
    %v301 = vpack.c.b16 %v233, %v232
    %v302 = vpack.c.b16 %v235, %v234
    %v303 = vpack.c.b16 %v237, %v236
    %v304 = vpack.c.b16 %v239, %v238
    %v305 = vpack.c.b16 %v241, %v240
    %v306 = vpack.c.b16 %v243, %v242
    %v307 = vpack.c.b16 %v245, %v244
    %v308 = vpack.c.b16 %v247, %v246
    %v309 = vpack.c.b16 %v249, %v248
    %v310 = vpack.c.b16 %v251, %v250
    %v311 = vpack.c.b16 %v253, %v252
    %v312 = vpack.c.b16 %v255, %v254
    %v313 = vpack.c.b16 %v257, %v256
    %v314 = vpack.c.b16 %v259, %v258
    %v315 = vpack.c.b16 %v261, %v260
    %v316 = vpack.c.b16 %v263, %v262
    %v317 = vpack.c.b16 %v265, %v264
    %v318 = vpack.c.b16 %v267, %v266
    %v319 = vpack.c.b16 %v269, %v268
    %v320 = vpack.c.b16 %v271, %v270
    %v321 = vpack.c.b16 %v273, %v272
    %v322 = vpack.c.b16 %v275, %v274
    %v323 = vpack.c.b16 %v277, %v276
    %v324 = vpack.c.b16 %v279, %v278
    %v325 = vpack.c.b16 %v281, %v280
    %v326 = vpack.c.b16 %v283, %v282
    %v327 = vpack.c.b16 %v285, %v284
    %v328 = vpack.c.b16 %v287, %v286
    %v329 = vpack.c.b16 %v289, %v288
    %370 = vmatprep.subr.bf16.mxu0 0
    %371 = vmatpush1.bf16.msra.mxu0 %v290
    %372 = vmatprep.subr.bf16.mxu0 0
    %373 = vmatpush1.bf16.msra.mxu0 %v291
    %374 = vmatprep.subr.bf16.mxu0 0
    %375 = vmatpush1.bf16.msra.mxu0 %v292
    %376 = vmatprep.subr.bf16.mxu0 0
    %377 = vmatpush1.bf16.msra.mxu0 %v293
    %378 = vmatprep.subr.bf16.mxu0 0
    %379 = vmatpush1.bf16.msra.mxu0 %v294
    %380 = vmatprep.subr.bf16.mxu0 0
    %381 = vmatpush1.bf16.msra.mxu0 %v295
    %382 = vmatprep.subr.bf16.mxu0 0
    %383 = vmatpush1.bf16.msra.mxu0 %v296
    %384 = vmatprep.subr.bf16.mxu0 0
    %385 = vmatpush1.bf16.msra.mxu0 %v297
    %386 = vmatprep.subr.bf16.mxu0 0
    %387 = vmatpush1.bf16.msra.mxu0 %v298
    %388 = vmatprep.subr.bf16.mxu0 0
    %389 = vmatpush1.bf16.msra.mxu0 %v299
    %390 = vmatprep.subr.bf16.mxu0 0
    %391 = vmatpush1.bf16.msra.mxu0 %v300
    %392 = vmatprep.subr.bf16.mxu0 0
    %393 = vmatpush1.bf16.msra.mxu0 %v301
    %394 = vmatprep.subr.bf16.mxu0 0
    %395 = vmatpush1.bf16.msra.mxu0 %v302
    %396 = vmatprep.subr.bf16.mxu0 0
    %397 = vmatpush1.bf16.msra.mxu0 %v303
    %398 = vmatprep.subr.bf16.mxu0 0
    %399 = vmatpush1.bf16.msra.mxu0 %v304
    %400 = vmatprep.subr.bf16.mxu0 0
    %401 = vmatpush1.bf16.msra.mxu0 %v305
    %402 = vmatprep.mubr.bf16.mxu0 %v121
    %403 = vmatmul.mubr.bf16.gmra.mrb[0].mxu0 %v120
    %v404 = vpop.f32.mrb[0].mxu0
    %v405 = vadd.f32 0.0, %v404
    %v406 = vpop.f32.mrb[0].mxu0
    %v407 = vpop.f32.mrb[0].mxu0
    %v408 = vpop.f32.mrb[0].mxu0
    %409 = vdwg.mxu0
    %410 = vmatprep.subr.bf16.mxu0 0
    %411 = vmatpush1.bf16.msra.mxu0 %v306
    %412 = vmatprep.subr.bf16.mxu0 0
    %413 = vmatpush1.bf16.msra.mxu0 %v307
    %414 = vmatprep.subr.bf16.mxu0 0
    %415 = vmatpush1.bf16.msra.mxu0 %v308
    %416 = vmatprep.subr.bf16.mxu0 0
    %417 = vmatpush1.bf16.msra.mxu0 %v309
    %418 = vmatprep.subr.bf16.mxu0 0
    %419 = vmatpush1.bf16.msra.mxu0 %v310
    %420 = vmatprep.subr.bf16.mxu0 0
    %421 = vmatpush1.bf16.msra.mxu0 %v311
    %422 = vmatprep.subr.bf16.mxu0 0
    %423 = vmatpush1.bf16.msra.mxu0 %v312
    %424 = vmatprep.subr.bf16.mxu0 0
    %425 = vmatpush1.bf16.msra.mxu0 %v313
    %426 = vmatprep.subr.bf16.mxu0 0
    %427 = vmatpush1.bf16.msra.mxu0 %v314
    %428 = vmatprep.subr.bf16.mxu0 0
    %429 = vmatpush1.bf16.msra.mxu0 %v315
    %430 = vmatprep.subr.bf16.mxu0 0
    %431 = vmatpush1.bf16.msra.mxu0 %v316
    %432 = vmatprep.subr.bf16.mxu0 0
    %433 = vmatpush1.bf16.msra.mxu0 %v317
    %434 = vmatprep.subr.bf16.mxu0 0
    %435 = vmatpush1.bf16.msra.mxu0 %v318
    %436 = vmatprep.subr.bf16.mxu0 0
    %437 = vmatpush1.bf16.msra.mxu0 %v319
    %438 = vmatprep.subr.bf16.mxu0 0
    %439 = vmatpush1.bf16.msra.mxu0 %v320
    %440 = vmatprep.subr.bf16.mxu0 0
    %441 = vmatpush1.bf16.msra.mxu0 %v321
    %442 = vmatprep.mubr.bf16.mxu0 %v123
    %443 = vmatmul.mubr.bf16.gmra.mrb[0].mxu0 %v122
    %v444 = vpop.f32.mrb[0].mxu0
    %v445 = vadd.f32 %v405, %v444
    %v446 = vpop.f32.mrb[0].mxu0
    %v447 = vpop.f32.mrb[0].mxu0
    %v448 = vpop.f32.mrb[0].mxu0
    %449 = vdwg.mxu0
    %450 = vmatprep.subr.bf16.mxu0 0
    %451 = vmatpush1.bf16.msra.mxu0 %v322
    %452 = vmatprep.subr.bf16.mxu0 0
    %453 = vmatpush1.bf16.msra.mxu0 %v323
    %454 = vmatprep.subr.bf16.mxu0 0
    %455 = vmatpush1.bf16.msra.mxu0 %v324
    %456 = vmatprep.subr.bf16.mxu0 0
    %457 = vmatpush1.bf16.msra.mxu0 %v325
    %458 = vmatprep.subr.bf16.mxu0 0
    %459 = vmatpush1.bf16.msra.mxu0 %v326
    %460 = vmatprep.subr.bf16.mxu0 0
    %461 = vmatpush1.bf16.msra.mxu0 %v327
    %462 = vmatprep.subr.bf16.mxu0 0
    %463 = vmatpush1.bf16.msra.mxu0 %v328
    %464 = vmatprep.subr.bf16.mxu0 0
    %465 = vmatpush1.bf16.msra.mxu0 %v329
    %466 = vmatprep.subr.bf16.mxu0 0
    %467 = vmatpush1.bf16.msra.mxu0 0
    %468 = vmatprep.subr.bf16.mxu0 0
    %469 = vmatpush1.bf16.msra.mxu0 0
    %470 = vmatprep.subr.bf16.mxu0 0
    %471 = vmatpush1.bf16.msra.mxu0 0
    %472 = vmatprep.subr.bf16.mxu0 0
    %473 = vmatpush1.bf16.msra.mxu0 0
    %474 = vmatprep.subr.bf16.mxu0 0
    %475 = vmatpush1.bf16.msra.mxu0 0
    %476 = vmatprep.subr.bf16.mxu0 0
    %477 = vmatpush1.bf16.msra.mxu0 0
    %478 = vmatprep.subr.bf16.mxu0 0
    %479 = vmatpush1.bf16.msra.mxu0 0
    %480 = vmatprep.subr.bf16.mxu0 0
    %481 = vmatpush1.bf16.msra.mxu0 0
    %482 = vmatprep.mubr.bf16.mxu0 0
    %483 = vmatmul.mubr.bf16.gmra.mrb[0].mxu0 %v124
    %v484 = vpop.f32.mrb[0].mxu0
    %v485 = vadd.f32 %v445, %v484
    %v486 = vpop.f32.mrb[0].mxu0
    %v487 = vpop.f32.mrb[0].mxu0
    %v488 = vpop.f32.mrb[0].mxu0
    %489 = vdwg.mxu0
    %v490 = vadd.f32 %v28, %v485
    %vm491 = vcmask 523264
    %492 = vst.msk [vmem:[#allocation2] sm:$0xff] %vm491, %v490
    // Predicated region
    $region26: #{spatial_path_forward.5} parent=1 // pred_check
      %p493 = pneg %p22
    $region27: #{spatial_path_forward.5} parent=1 // pred_check_branch
      %495 = sbr.rel (%p493) target = $region29
    $region28: #{spatial_path_forward.5} parent=1 // pred_region
      %v496 = vld [vmem:[#allocation2] sm:$0xff]
      %v497 = vld [vmem:[%s2] sm:$0x1]
      %v499 = vlaneseq
      %v500 = vshrl.u32 %v499, 7
      %v501 = vsub.s32 0, %v500
      %v502 = vrot.slane %v497, %v501
      %v504 = vadd.f32 %v496, %v502
      %v505 = vmax.f32 %v504, 0.0
      %v506 = vpack.c.bf16 %v505, %v505
      %v507 = vld [vmem:[%s3] sm:$0xf]
      %v508 = vld [vmem:[%s3 + $0x4] sm:$0xf]
      %v509 = vld [vmem:[%s3 + $0x8] sm:$0xf]
      %v510 = vld [vmem:[%s3 + $0xc] sm:$0xf]
      %v511 = vld [vmem:[%s3 + $0x10] sm:$0xf]
      %v512 = vld [vmem:[%s3 + $0x14] sm:$0xf]
      %v513 = vld [vmem:[%s3 + $0x18] sm:$0xf]
      %v514 = vld [vmem:[%s3 + $0x1c] sm:$0xf]
      %v515 = vld [vmem:[%s4] sm:$0x1]
      %v517 = vlaneseq
      %v518 = vshrl.u32 %v517, 7
      %v519 = vsub.s32 0, %v518
      %v520 = vrot.slane %v515, %v519
      %v530 = vunpack.c.l.b16 %v507
      %v531 = vunpack.c.l.b16 %v508
      %v532 = vunpack.c.l.b16 %v509
      %v533 = vunpack.c.l.b16 %v510
      %v534 = vunpack.c.l.b16 %v511
      %v535 = vunpack.c.l.b16 %v512
      %v536 = vunpack.c.l.b16 %v513
      %v537 = vunpack.c.l.b16 %v514
      %v538 = vpack.c.b16 %v531, %v530
      %v539 = vpack.c.b16 %v533, %v532
      %v540 = vpack.c.b16 %v535, %v534
      %v541 = vpack.c.b16 %v537, %v536
      %v547 = vsel %vm491, %v506, 0
      %549 = vmatprep.subr.bf16.mxu0 0
      %550 = vmatpush1.bf16.msra.mxu0 %v538
      %551 = vmatprep.subr.bf16.mxu0 0
      %552 = vmatpush1.bf16.msra.mxu0 %v539
      %553 = vmatprep.subr.bf16.mxu0 0
      %554 = vmatpush1.bf16.msra.mxu0 %v540
      %555 = vmatprep.subr.bf16.mxu0 0
      %556 = vmatpush1.bf16.msra.mxu0 %v541
      %557 = vmatprep.subr.bf16.mxu0 0
      %558 = vmatpush1.bf16.msra.mxu0 0
      %559 = vmatprep.subr.bf16.mxu0 0
      %560 = vmatpush1.bf16.msra.mxu0 0
      %561 = vmatprep.subr.bf16.mxu0 0
      %562 = vmatpush1.bf16.msra.mxu0 0
      %563 = vmatprep.subr.bf16.mxu0 0
      %564 = vmatpush1.bf16.msra.mxu0 0
      %565 = vmatprep.subr.bf16.mxu0 0
      %566 = vmatpush1.bf16.msra.mxu0 0
      %567 = vmatprep.subr.bf16.mxu0 0
      %568 = vmatpush1.bf16.msra.mxu0 0
      %569 = vmatprep.subr.bf16.mxu0 0
      %570 = vmatpush1.bf16.msra.mxu0 0
      %571 = vmatprep.subr.bf16.mxu0 0
      %572 = vmatpush1.bf16.msra.mxu0 0
      %573 = vmatprep.subr.bf16.mxu0 0
      %574 = vmatpush1.bf16.msra.mxu0 0
      %575 = vmatprep.subr.bf16.mxu0 0
      %576 = vmatpush1.bf16.msra.mxu0 0
      %577 = vmatprep.subr.bf16.mxu0 0
      %578 = vmatpush1.bf16.msra.mxu0 0
      %579 = vmatprep.subr.bf16.mxu0 0
      %580 = vmatpush1.bf16.msra.mxu0 0
      %581 = vmatprep.mubr.bf16.mxu0 0
      %582 = vmatmul.mubr.bf16.gmra.mrb[0].mxu0 %v547
      %v583 = vpop.f32.mrb[0].mxu0
      %v584 = vadd.f32 %v520, %v583
      %v585 = vpop.f32.mrb[0].mxu0
      %v586 = vpop.f32.mrb[0].mxu0
      %v587 = vpop.f32.mrb[0].mxu0
      %588 = vdwg.mxu0
      %v589 = vmax.f32 %v584, 0.0
      %vm590 = vcmask 261120
      %591 = vst.msk [vmem:[#allocation3] sm:$0xff] %vm590, %v589
    $region29: #{spatial_path_forward.5} parent=1 // pred_fallthru
      _
    // Predicated region
    $region30: #{spatial_path_forward.5} parent=1 // pred_check
      _
    $region31: #{spatial_path_forward.5} parent=1 // pred_check_branch
      %593 = sbr.rel (0) target = $region33
    $region32: #{spatial_path_forward.5} parent=1 // pred_region
      %s595 = ssub.s32 128, 128
      %596 = vsyncadd [#allocation4], %s595
      %s598 = sshll.u32 [#allocation3], 4
      %s599 = int_to_ptr.vmem [resolvable:$true] %s598
      %601 = dma.vmem_to_hbm [thread:$0]  %s599, 128, %s5, [#allocation4]
    $region33: #{spatial_path_forward.5} parent=1 // pred_fallthru
      _
    // Predicated region
    $region34: #{spatial_path_forward.5} parent=1 // pred_check
      _
    $region35: #{spatial_path_forward.5} parent=1 // pred_check_branch
      %603 = sbr.rel (0) target = $region37
    $region36: #{spatial_path_forward.5} parent=1 // pred_region
      %604 = dma.done [#allocation4], 128
    $region37: #{spatial_path_forward.5} parent=1 // pred_fallthru
      _
    %605 = vsyncpa [#allocation4], 1

</llo_original>
